<compile_context>
chip_gen: v7x
topology: tpu7x:2x2x1
jax: 0.10.0
libtpu: 0.0.40
codegen_flags: <defaults>
</compile_context>

<pallas_src>
import functools

import jax
import jax.numpy as jnp
from jax.experimental import pallas as pl
from jax.experimental.pallas import tpu as pltpu

THRESH = 0.5      # base
EPSILON = 0.1     # miner epsilon
SCALE_POS = 2.0   # alpha
SCALE_NEG = 50.0  # beta


def _row_sum_mxu(mat, ones_col):
    """(TM, TN) -> (TM, 1) row sum as an MXU matmul (keeps the XLU free for max/min)."""
    return jax.lax.dot_general(mat, ones_col, (((1,), (0,)), ((), ())),
                               preferred_element_type=jnp.float32)


def ms_loss_kernel(emb_r_ref, emb_c_ref, lab_c_ref, lab_r_ref,     # inputs
                   loss_ref, cnt_ref,                              # outputs
                   max_neg, min_pos, pos_m, pos_s, neg_m, neg_s):  # scratch
    i = pl.program_id(0)        # anchor-row tile          ("parallel")
    p = pl.program_id(1)        # pass: 0=stats, 1=LSE     ("arbitrary")
    j = pl.program_id(2)        # column tile (reduction)  ("arbitrary")
    nj = pl.num_programs(2)

    tm = loss_ref.shape[0]
    tn = lab_r_ref.shape[1]
    neg_inf = jnp.float32(-jnp.inf)

    # --- cosine-similarity tile: normalize both tiles, contract over (padded) features ---
    xr = emb_r_ref[...].astype(jnp.float32)                        # (tm, Dp)
    xc = emb_c_ref[...].astype(jnp.float32)                        # (tn, Dp)
    er = xr / jnp.maximum(jnp.sqrt(jnp.sum(xr * xr, axis=-1, keepdims=True)), 1e-12)
    ec = xc / jnp.maximum(jnp.sqrt(jnp.sum(xc * xc, axis=-1, keepdims=True)), 1e-12)
    sim = jax.lax.dot_general(er, ec, (((1,), (1,)), ((), ())),
                              preferred_element_type=jnp.float32)  # (tm, tn) = Er @ Ec.T

    # --- pair masks for this tile ---
    same = lab_c_ref[...] == lab_r_ref[...]                        # (tm,1)==(1,tn) -> (tm,tn)
    row_g = i * tm + jax.lax.broadcasted_iota(jnp.int32, (tm, tn), 0)
    col_g = j * tn + jax.lax.broadcasted_iota(jnp.int32, (tm, tn), 1)
    pos_mask = same & (row_g != col_g)
    neg_mask = ~same

    @pl.when(p == 0)
    def _stats_pass():
        @pl.when(j == 0)
        def _():
            max_neg[...] = jnp.full_like(max_neg, -jnp.inf)
            min_pos[...] = jnp.full_like(min_pos, jnp.inf)

        max_neg[...] = jnp.maximum(
            max_neg[...],
            jnp.max(jnp.where(neg_mask, sim, -jnp.inf), axis=1, keepdims=True))
        min_pos[...] = jnp.minimum(
            min_pos[...],
            jnp.min(jnp.where(pos_mask, sim, jnp.inf), axis=1, keepdims=True))

    @pl.when(p == 1)
    def _lse_pass():
        @pl.when(j == 0)
        def _():
            # log(1 + sum exp(v)) == LSE over {0} U {v}: start running max=0, running sum=1.
            pos_m[...] = jnp.zeros_like(pos_m)
            pos_s[...] = jnp.ones_like(pos_s)
            neg_m[...] = jnp.zeros_like(neg_m)
            neg_s[...] = jnp.ones_like(neg_s)
            cnt_ref[...] = jnp.zeros_like(cnt_ref)

        # MultiSimilarityMiner hard-pair selection (uses the completed pass-0 row stats).
        hard_pos = pos_mask & ((sim - EPSILON) < max_neg[...])
        hard_neg = neg_mask & ((sim + EPSILON) > min_pos[...])

        # Masked values; exp(-inf) == 0 provides the masking downstream for free.
        pv = jnp.where(hard_pos, SCALE_POS * (THRESH - sim), neg_inf)
        nv = jnp.where(hard_neg, SCALE_NEG * (sim - THRESH), neg_inf)

        ones_col = jnp.ones((tn, 1), jnp.float32)

        # Online (flash-style) masked logsumexp updates; running max never drops below 0.
        pm_new = jnp.maximum(pos_m[...], jnp.max(pv, axis=1, keepdims=True))
        pos_s[...] = (pos_s[...] * jnp.exp(pos_m[...] - pm_new)
                      + _row_sum_mxu(jnp.exp(pv - pm_new), ones_col))
        pos_m[...] = pm_new

        nm_new = jnp.maximum(neg_m[...], jnp.max(nv, axis=1, keepdims=True))
        neg_s[...] = (neg_s[...] * jnp.exp(neg_m[...] - nm_new)
                      + _row_sum_mxu(jnp.exp(nv - nm_new), ones_col))
        neg_m[...] = nm_new

        # Per-anchor hard-pair counts (for the global "<=1 pair" early exit), also via MXU.
        cnt_ref[...] += jnp.concatenate(
            [_row_sum_mxu(jnp.where(hard_pos, 1.0, 0.0).astype(jnp.float32), ones_col),
             _row_sum_mxu(jnp.where(hard_neg, 1.0, 0.0).astype(jnp.float32), ones_col)],
            axis=1)

        @pl.when(j == nj - 1)
        def _finalize():
            loss_ref[...] = ((1.0 / SCALE_POS) * (pos_m[...] + jnp.log(pos_s[...]))
                             + (1.0 / SCALE_NEG) * (neg_m[...] + jnp.log(neg_s[...])))


def _pick_tile(n, cap, mult):
    """Largest tile <= cap that divides n and is a multiple of `mult`; fall back to n (full dim)."""
    if n <= cap:
        return n
    start = cap - cap % mult
    for t in range(start, 0, -mult):
        if n % t == 0:
            return t
    return n


@functools.partial(jax.jit, static_argnames=("tm_cap", "tn_cap"))
def multi_similarity_loss(embeddings, labels, *, tm_cap=256, tn_cap=512):
    N, D = embeddings.shape

    # Lane-align the feature dim (zero padding is inert for norms and dot products).
    Dp = ((D + 127) // 128) * 128
    if Dp != D:
        embeddings = jnp.pad(embeddings, ((0, 0), (0, Dp - D)))

    TM = _pick_tile(N, tm_cap, 8)      # anchor-row tile (sublane axis)
    TN = _pick_tile(N, tn_cap, 128)    # column tile (lane axis)
    ni, nj = N // TM, N // TN

    lab_col = labels.astype(jnp.int32).reshape(N, 1)
    lab_row = labels.astype(jnp.int32).reshape(1, N)

    emb_bytes = embeddings.dtype.itemsize
    cost = pl.CostEstimate(
        flops=4 * N * N * Dp + 32 * N * N,
        transcendentals=2 * N * N + 4 * N,
        bytes_accessed=(2 * ni + 1) * N * Dp * emb_bytes + 8 * N * ni + 12 * N,
    )

    per_anchor, counts = pl.pallas_call(
        ms_loss_kernel,
        out_shape=(jax.ShapeDtypeStruct((N, 1), jnp.float32),
                   jax.ShapeDtypeStruct((N, 2), jnp.float32)),
        grid_spec=pltpu.PrefetchScalarGridSpec(
            num_scalar_prefetch=0,
            grid=(ni, 2, nj),
            in_specs=[
                pl.BlockSpec((TM, Dp), lambda i, p, j: (i, 0)),   # anchor-row embeddings
                pl.BlockSpec((TN, Dp), lambda i, p, j: (j, 0)),   # column embeddings
                pl.BlockSpec((TM, 1), lambda i, p, j: (i, 0)),    # labels as column vector
                pl.BlockSpec((1, TN), lambda i, p, j: (0, j)),    # labels as row vector
            ],
            out_specs=[
                pl.BlockSpec((TM, 1), lambda i, p, j: (i, 0)),    # per-anchor loss
                pl.BlockSpec((TM, 2), lambda i, p, j: (i, 0)),    # per-anchor hard-pair counts
            ],
            scratch_shapes=[pltpu.VMEM((TM, 1), jnp.float32) for _ in range(6)],
        ),
        compiler_params=pltpu.CompilerParams(
            dimension_semantics=("parallel", "arbitrary", "arbitrary"),
            vmem_limit_bytes=32 * 1024 * 1024,
        ),
        cost_estimate=cost,
    )(embeddings, embeddings, lab_col, lab_row)

    # Tiny O(N) finalization (mean + GenericPairLoss "<=1 pair" early exit) in plain JAX so the
    # anchor-row grid axis stays megacore-parallel without a cross-core scalar accumulator.
    n_pos = jnp.sum(counts[:, 0])
    n_neg = jnp.sum(counts[:, 1])
    degenerate = (n_pos <= 1.0) & (n_neg <= 1.0)
    return jnp.where(degenerate, jnp.float32(0.0), jnp.mean(per_anchor))


def _reference(embeddings, labels):
    """Pure-JAX reference mirroring pytorch-metric-learning semantics (for sanity check)."""
    x = embeddings.astype(jnp.float32)
    e = x / jnp.maximum(jnp.linalg.norm(x, axis=-1, keepdims=True), 1e-12)
    sim = e @ e.T
    n = sim.shape[0]
    same = labels[:, None] == labels[None, :]
    diag = jnp.eye(n, dtype=bool)
    pos_mask = same & ~diag
    neg_mask = ~same
    max_neg = jnp.max(jnp.where(neg_mask, sim, -jnp.inf), axis=1, keepdims=True)
    min_pos = jnp.min(jnp.where(pos_mask, sim, jnp.inf), axis=1, keepdims=True)
    hard_pos = pos_mask & ((sim - EPSILON) < max_neg)
    hard_neg = neg_mask & ((sim + EPSILON) > min_pos)

    def lse1(vals, mask):
        z = jnp.where(mask, vals, -jnp.inf)
        z = jnp.concatenate([z, jnp.zeros((n, 1), jnp.float32)], axis=1)
        out = jax.scipy.special.logsumexp(z, axis=1, keepdims=True)
        return jnp.where(jnp.any(mask, axis=1, keepdims=True), out, 0.0)

    pos_loss = (1.0 / SCALE_POS) * lse1(SCALE_POS * (THRESH - sim), hard_pos)
    neg_loss = (1.0 / SCALE_NEG) * lse1(SCALE_NEG * (sim - THRESH), hard_neg)
    loss = jnp.mean(pos_loss + neg_loss)
    degenerate = (jnp.sum(hard_pos) <= 1) & (jnp.sum(hard_neg) <= 1)
    return jnp.where(degenerate, 0.0, loss)


if __name__ == "__main__":
    key = jax.random.PRNGKey(0)
    k1, k2, k3, k4 = jax.random.split(key, 4)

    # Small case (single tile, grid (1, 2, 1)).
    N, D, num_classes = 64, 32, 4
    embeddings = jax.random.normal(k1, (N, D), dtype=jnp.float32)
    labels = jax.random.randint(k2, (N,), 0, num_classes, dtype=jnp.int32)
    loss = jax.block_until_ready(multi_similarity_loss(embeddings, labels))
    ref = _reference(embeddings, labels)
    assert jnp.isfinite(loss), loss
    assert jnp.allclose(loss, ref, atol=1e-4, rtol=1e-3), (float(loss), float(ref))

    # Slightly larger case that exercises real row/column tiling (grid (4, 2, 2)).
    N2, D2, num_classes2 = 256, 32, 8
    emb2 = jax.random.normal(k3, (N2, D2), dtype=jnp.float32)
    lab2 = jax.random.randint(k4, (N2,), 0, num_classes2, dtype=jnp.int32)
    loss2 = jax.block_until_ready(multi_similarity_loss(emb2, lab2, tm_cap=64, tn_cap=128))
    ref2 = _reference(emb2, lab2)
    assert jnp.isfinite(loss2), loss2
    assert jnp.allclose(loss2, ref2, atol=1e-4, rtol=1e-3), (float(loss2), float(ref2))

    print("KERNEL_OK")
</pallas_src>

<mosaic_0001>
module attributes {stable_mosaic.version = 11 : i64} {
  func.func @ms_loss_kernel(%arg0: i32, %arg1: i32, %arg2: i32, %arg3: memref<64x128xf32, #tpu.memory_space<vmem>>, %arg4: memref<64x128xf32, #tpu.memory_space<vmem>>, %arg5: memref<64x1xi32, #tpu.memory_space<vmem>>, %arg6: memref<1x64xi32, #tpu.memory_space<vmem>>, %arg7: memref<64x1xf32, #tpu.memory_space<vmem>>, %arg8: memref<64x2xf32, #tpu.memory_space<vmem>>, %arg9: memref<64x1xf32, #tpu.memory_space<vmem>>, %arg10: memref<64x1xf32, #tpu.memory_space<vmem>>, %arg11: memref<64x1xf32, #tpu.memory_space<vmem>>, %arg12: memref<64x1xf32, #tpu.memory_space<vmem>>, %arg13: memref<64x1xf32, #tpu.memory_space<vmem>>, %arg14: memref<64x1xf32, #tpu.memory_space<vmem>>) attributes {dimension_semantics = [#tpu.dimension_semantics<parallel>, #tpu.dimension_semantics<arbitrary>, #tpu.dimension_semantics<arbitrary>], iteration_bounds = array<i64: 1, 2, 1>, scalar_prefetch = 0 : i64, scratch_operands = 6 : i64, tpu.core_type = #tpu.core_type<tc>, window_params = [{transform_indices = @transform_0, window_bounds = array<i64: 64, 128>}, {transform_indices = @transform_1, window_bounds = array<i64: 64, 128>}, {transform_indices = @transform_2, window_bounds = array<i64: 64, 1>}, {transform_indices = @transform_3, window_bounds = array<i64: 1, 64>}, {transform_indices = @transform_4, window_bounds = array<i64: 64, 1>}, {transform_indices = @transform_5, window_bounds = array<i64: 64, 2>}]} {
    %c0 = arith.constant 0 : index
    %c0_0 = arith.constant 0 : index
    %0 = vector.load %arg3[%c0, %c0_0] : memref<64x128xf32, #tpu.memory_space<vmem>>, vector<64x128xf32>
    %c0_1 = arith.constant 0 : index
    %c0_2 = arith.constant 0 : index
    %1 = vector.load %arg4[%c0_1, %c0_2] : memref<64x128xf32, #tpu.memory_space<vmem>>, vector<64x128xf32>
    %2 = arith.mulf %0, %0 : vector<64x128xf32>
    %cst = arith.constant dense<0.000000e+00> : vector<64xf32>
    %3 = vector.multi_reduction <add>, %2, %cst [1] : vector<64x128xf32> to vector<64xf32>
    %4 = vector.shape_cast %3 : vector<64xf32> to vector<64x1xf32>
    %5 = math.sqrt %4 : vector<64x1xf32>
    %cst_3 = arith.constant 9.99999996E-13 : f32
    %6 = vector.broadcast %cst_3 : f32 to vector<64x1xf32>
    %7 = arith.maximumf %5, %6 : vector<64x1xf32>
    %8 = vector.broadcast %7 : vector<64x1xf32> to vector<64x128xf32>
    %9 = arith.divf %0, %8 : vector<64x128xf32>
    %10 = arith.mulf %1, %1 : vector<64x128xf32>
    %cst_4 = arith.constant dense<0.000000e+00> : vector<64xf32>
    %11 = vector.multi_reduction <add>, %10, %cst_4 [1] : vector<64x128xf32> to vector<64xf32>
    %12 = vector.shape_cast %11 : vector<64xf32> to vector<64x1xf32>
    %13 = math.sqrt %12 : vector<64x1xf32>
    %cst_5 = arith.constant 9.99999996E-13 : f32
    %14 = vector.broadcast %cst_5 : f32 to vector<64x1xf32>
    %15 = arith.maximumf %13, %14 : vector<64x1xf32>
    %16 = vector.broadcast %15 : vector<64x1xf32> to vector<64x128xf32>
    %17 = arith.divf %1, %16 : vector<64x128xf32>
    %cst_6 = arith.constant dense<0.000000e+00> : vector<64x64xf32>
    %18 = tpu.matmul %9, %17, %cst_6 {dimension_numbers = #tpu.dot_dimension_numbers<[1], [1], [0], [0], [0, 0, 1, 0], [], []>} : vector<64x128xf32>, vector<64x128xf32>, vector<64x64xf32> -> vector<64x64xf32>
    %c0_7 = arith.constant 0 : index
    %c0_8 = arith.constant 0 : index
    %19 = vector.load %arg5[%c0_7, %c0_8] : memref<64x1xi32, #tpu.memory_space<vmem>>, vector<64x1xi32>
    %c0_9 = arith.constant 0 : index
    %c0_10 = arith.constant 0 : index
    %20 = vector.load %arg6[%c0_9, %c0_10] : memref<1x64xi32, #tpu.memory_space<vmem>>, vector<1x64xi32>
    %21 = vector.broadcast %19 : vector<64x1xi32> to vector<64x64xi32>
    %22 = vector.broadcast %20 : vector<1x64xi32> to vector<64x64xi32>
    %23 = arith.cmpi eq, %21, %22 : vector<64x64xi32>
    %c64_i32 = arith.constant 64 : i32
    %24 = arith.muli %arg0, %c64_i32 : i32
    %25 = tpu.iota {dimensions = array<i32: 0>} : vector<64x64xi32>
    %26 = vector.broadcast %24 : i32 to vector<64x64xi32>
    %27 = arith.addi %26, %25 : vector<64x64xi32>
    %c64_i32_11 = arith.constant 64 : i32
    %28 = arith.muli %arg2, %c64_i32_11 : i32
    %29 = tpu.iota {dimensions = array<i32: 1>} : vector<64x64xi32>
    %30 = vector.broadcast %28 : i32 to vector<64x64xi32>
    %31 = arith.addi %30, %29 : vector<64x64xi32>
    %32 = arith.cmpi ne, %27, %31 : vector<64x64xi32>
    %33 = arith.andi %23, %32 : vector<64x64xi1>
    %cst_12 = arith.constant dense<true> : vector<64x64xi1>
    %34 = arith.xori %23, %cst_12 : vector<64x64xi1>
    %c0_i32 = arith.constant 0 : i32
    %35 = arith.cmpi eq, %arg1, %c0_i32 : i32
    %36 = arith.extui %35 : i1 to i32
    %c0_i32_13 = arith.constant 0 : i32
    %37 = arith.cmpi ne, %36, %c0_i32_13 : i32
    scf.if %37 {
      %c0_i32_16 = arith.constant 0 : i32
      %41 = arith.cmpi eq, %arg2, %c0_i32_16 : i32
      %42 = arith.extui %41 : i1 to i32
      %c0_i32_17 = arith.constant 0 : i32
      %43 = arith.cmpi ne, %42, %c0_i32_17 : i32
      scf.if %43 {
        %cst_30 = arith.constant 0xFF800000 : f32
        %58 = vector.broadcast %cst_30 : f32 to vector<64x1xf32>
        %c0_31 = arith.constant 0 : index
        %c0_32 = arith.constant 0 : index
        %59 = vector.load %arg9[%c0_31, %c0_32] : memref<64x1xf32, #tpu.memory_space<vmem>>, vector<64x1xf32>
        tpu.vector_store %arg9[%c0_31, %c0_32], %58 {strides = array<i32>} : memref<64x1xf32, #tpu.memory_space<vmem>>, vector<64x1xf32>,
        %cst_33 = arith.constant 0x7F800000 : f32
        %60 = vector.broadcast %cst_33 : f32 to vector<64x1xf32>
        %c0_34 = arith.constant 0 : index
        %c0_35 = arith.constant 0 : index
        %61 = vector.load %arg10[%c0_34, %c0_35] : memref<64x1xf32, #tpu.memory_space<vmem>>, vector<64x1xf32>
        tpu.vector_store %arg10[%c0_34, %c0_35], %60 {strides = array<i32>} : memref<64x1xf32, #tpu.memory_space<vmem>>, vector<64x1xf32>,
      } else {
      }
      %c0_18 = arith.constant 0 : index
      %c0_19 = arith.constant 0 : index
      %44 = vector.load %arg9[%c0_18, %c0_19] : memref<64x1xf32, #tpu.memory_space<vmem>>, vector<64x1xf32>
      %cst_20 = arith.constant 0xFF800000 : f32
      %45 = vector.broadcast %cst_20 : f32 to vector<64x64xf32>
      %46 = arith.select %34, %18, %45 : vector<64x64xi1>, vector<64x64xf32>
      %cst_21 = arith.constant dense<0xFF800000> : vector<64xf32>
      %47 = vector.multi_reduction <maximumf>, %46, %cst_21 [1] : vector<64x64xf32> to vector<64xf32>
      %48 = vector.shape_cast %47 : vector<64xf32> to vector<64x1xf32>
      %49 = arith.maximumf %44, %48 : vector<64x1xf32>
      %c0_22 = arith.constant 0 : index
      %c0_23 = arith.constant 0 : index
      %50 = vector.load %arg9[%c0_22, %c0_23] : memref<64x1xf32, #tpu.memory_space<vmem>>, vector<64x1xf32>
      tpu.vector_store %arg9[%c0_22, %c0_23], %49 {strides = array<i32>} : memref<64x1xf32, #tpu.memory_space<vmem>>, vector<64x1xf32>,
      %c0_24 = arith.constant 0 : index
      %c0_25 = arith.constant 0 : index
      %51 = vector.load %arg10[%c0_24, %c0_25] : memref<64x1xf32, #tpu.memory_space<vmem>>, vector<64x1xf32>
      %cst_26 = arith.constant 0x7F800000 : f32
      %52 = vector.broadcast %cst_26 : f32 to vector<64x64xf32>
      %53 = arith.select %33, %18, %52 : vector<64x64xi1>, vector<64x64xf32>
      %cst_27 = arith.constant dense<0x7F800000> : vector<64xf32>
      %54 = vector.multi_reduction <minimumf>, %53, %cst_27 [1] : vector<64x64xf32> to vector<64xf32>
      %55 = vector.shape_cast %54 : vector<64xf32> to vector<64x1xf32>
      %56 = arith.minimumf %51, %55 : vector<64x1xf32>
      %c0_28 = arith.constant 0 : index
      %c0_29 = arith.constant 0 : index
      %57 = vector.load %arg10[%c0_28, %c0_29] : memref<64x1xf32, #tpu.memory_space<vmem>>, vector<64x1xf32>
      tpu.vector_store %arg10[%c0_28, %c0_29], %56 {strides = array<i32>} : memref<64x1xf32, #tpu.memory_space<vmem>>, vector<64x1xf32>,
    } else {
    }
    %c1_i32 = arith.constant 1 : i32
    %38 = arith.cmpi eq, %arg1, %c1_i32 : i32
    %39 = arith.extui %38 : i1 to i32
    %cst_14 = arith.constant 0xFF800000 : f32
    %c0_i32_15 = arith.constant 0 : i32
    %40 = arith.cmpi ne, %39, %c0_i32_15 : i32
    scf.if %40 {
      %c0_i32_16 = arith.constant 0 : i32
      %41 = arith.cmpi eq, %arg2, %c0_i32_16 : i32
      %42 = arith.extui %41 : i1 to i32
      %c0_i32_17 = arith.constant 0 : i32
      %43 = arith.cmpi ne, %42, %c0_i32_17 : i32
      scf.if %43 {
        %cst_65 = arith.constant 0.000000e+00 : f32
        %116 = vector.broadcast %cst_65 : f32 to vector<64x1xf32>
        %c0_66 = arith.constant 0 : index
        %c0_67 = arith.constant 0 : index
        %117 = vector.load %arg11[%c0_66, %c0_67] : memref<64x1xf32, #tpu.memory_space<vmem>>, vector<64x1xf32>
        tpu.vector_store %arg11[%c0_66, %c0_67], %116 {strides = array<i32>} : memref<64x1xf32, #tpu.memory_space<vmem>>, vector<64x1xf32>,
        %cst_68 = arith.constant 1.000000e+00 : f32
        %118 = vector.broadcast %cst_68 : f32 to vector<64x1xf32>
        %c0_69 = arith.constant 0 : index
        %c0_70 = arith.constant 0 : index
        %119 = vector.load %arg12[%c0_69, %c0_70] : memref<64x1xf32, #tpu.memory_space<vmem>>, vector<64x1xf32>
        tpu.vector_store %arg12[%c0_69, %c0_70], %118 {strides = array<i32>} : memref<64x1xf32, #tpu.memory_space<vmem>>, vector<64x1xf32>,
        %cst_71 = arith.constant 0.000000e+00 : f32
        %120 = vector.broadcast %cst_71 : f32 to vector<64x1xf32>
        %c0_72 = arith.constant 0 : index
        %c0_73 = arith.constant 0 : index
        %121 = vector.load %arg13[%c0_72, %c0_73] : memref<64x1xf32, #tpu.memory_space<vmem>>, vector<64x1xf32>
        tpu.vector_store %arg13[%c0_72, %c0_73], %120 {strides = array<i32>} : memref<64x1xf32, #tpu.memory_space<vmem>>, vector<64x1xf32>,
        %cst_74 = arith.constant 1.000000e+00 : f32
        %122 = vector.broadcast %cst_74 : f32 to vector<64x1xf32>
        %c0_75 = arith.constant 0 : index
        %c0_76 = arith.constant 0 : index
        %123 = vector.load %arg14[%c0_75, %c0_76] : memref<64x1xf32, #tpu.memory_space<vmem>>, vector<64x1xf32>
        tpu.vector_store %arg14[%c0_75, %c0_76], %122 {strides = array<i32>} : memref<64x1xf32, #tpu.memory_space<vmem>>, vector<64x1xf32>,
        %cst_77 = arith.constant 0.000000e+00 : f32
        %124 = vector.broadcast %cst_77 : f32 to vector<64x2xf32>
        %c0_78 = arith.constant 0 : index
        %c0_79 = arith.constant 0 : index
        %125 = vector.load %arg8[%c0_78, %c0_79] : memref<64x2xf32, #tpu.memory_space<vmem>>, vector<64x2xf32>
        tpu.vector_store %arg8[%c0_78, %c0_79], %124 {strides = array<i32>} : memref<64x2xf32, #tpu.memory_space<vmem>>, vector<64x2xf32>,
      } else {
      }
      %cst_18 = arith.constant 1.000000e-01 : f32
      %44 = vector.broadcast %cst_18 : f32 to vector<64x64xf32>
      %45 = arith.subf %18, %44 : vector<64x64xf32>
      %c0_19 = arith.constant 0 : index
      %c0_20 = arith.constant 0 : index
      %46 = vector.load %arg9[%c0_19, %c0_20] : memref<64x1xf32, #tpu.memory_space<vmem>>, vector<64x1xf32>
      %47 = vector.broadcast %46 : vector<64x1xf32> to vector<64x64xf32>
      %48 = arith.cmpf olt, %45, %47 : vector<64x64xf32>
      %49 = arith.andi %33, %48 : vector<64x64xi1>
      %cst_21 = arith.constant 1.000000e-01 : f32
      %50 = vector.broadcast %cst_21 : f32 to vector<64x64xf32>
      %51 = arith.addf %18, %50 : vector<64x64xf32>
      %c0_22 = arith.constant 0 : index
      %c0_23 = arith.constant 0 : index
      %52 = vector.load %arg10[%c0_22, %c0_23] : memref<64x1xf32, #tpu.memory_space<vmem>>, vector<64x1xf32>
      %53 = vector.broadcast %52 : vector<64x1xf32> to vector<64x64xf32>
      %54 = arith.cmpf ogt, %51, %53 : vector<64x64xf32>
      %55 = arith.andi %34, %54 : vector<64x64xi1>
      %cst_24 = arith.constant 5.000000e-01 : f32
      %56 = vector.broadcast %cst_24 : f32 to vector<64x64xf32>
      %57 = arith.subf %56, %18 : vector<64x64xf32>
      %cst_25 = arith.constant 2.000000e+00 : f32
      %58 = vector.broadcast %cst_25 : f32 to vector<64x64xf32>
      %59 = arith.mulf %58, %57 : vector<64x64xf32>
      %60 = vector.broadcast %cst_14 : f32 to vector<64x64xf32>
      %61 = arith.select %49, %59, %60 : vector<64x64xi1>, vector<64x64xf32>
      %cst_26 = arith.constant 5.000000e-01 : f32
      %62 = vector.broadcast %cst_26 : f32 to vector<64x64xf32>
      %63 = arith.subf %18, %62 : vector<64x64xf32>
      %cst_27 = arith.constant 5.000000e+01 : f32
      %64 = vector.broadcast %cst_27 : f32 to vector<64x64xf32>
      %65 = arith.mulf %64, %63 : vector<64x64xf32>
      %66 = vector.broadcast %cst_14 : f32 to vector<64x64xf32>
      %67 = arith.select %55, %65, %66 : vector<64x64xi1>, vector<64x64xf32>
      %cst_28 = arith.constant 1.000000e+00 : f32
      %68 = vector.broadcast %cst_28 : f32 to vector<64x1xf32>
      %c0_29 = arith.constant 0 : index
      %c0_30 = arith.constant 0 : index
      %69 = vector.load %arg11[%c0_29, %c0_30] : memref<64x1xf32, #tpu.memory_space<vmem>>, vector<64x1xf32>
      %cst_31 = arith.constant dense<0xFF800000> : vector<64xf32>
      %70 = vector.multi_reduction <maximumf>, %61, %cst_31 [1] : vector<64x64xf32> to vector<64xf32>
      %71 = vector.shape_cast %70 : vector<64xf32> to vector<64x1xf32>
      %72 = arith.maximumf %69, %71 : vector<64x1xf32>
      %c0_32 = arith.constant 0 : index
      %c0_33 = arith.constant 0 : index
      %73 = vector.load %arg12[%c0_32, %c0_33] : memref<64x1xf32, #tpu.memory_space<vmem>>, vector<64x1xf32>
      %c0_34 = arith.constant 0 : index
      %c0_35 = arith.constant 0 : index
      %74 = vector.load %arg11[%c0_34, %c0_35] : memref<64x1xf32, #tpu.memory_space<vmem>>, vector<64x1xf32>
      %75 = arith.subf %74, %72 : vector<64x1xf32>
      %76 = math.exp %75 : vector<64x1xf32>
      %77 = arith.mulf %73, %76 : vector<64x1xf32>
      %78 = vector.broadcast %72 : vector<64x1xf32> to vector<64x64xf32>
      %79 = arith.subf %61, %78 : vector<64x64xf32>
      %80 = math.exp %79 : vector<64x64xf32>
      %cst_36 = arith.constant dense<0.000000e+00> : vector<64x1xf32>
      %81 = tpu.matmul %80, %68, %cst_36 {dimension_numbers = #tpu.dot_dimension_numbers<[1], [0], [0], [1], [0, 0, 1, 1], [], []>} : vector<64x64xf32>, vector<64x1xf32>, vector<64x1xf32> -> vector<64x1xf32>
      %82 = arith.addf %77, %81 : vector<64x1xf32>
      %c0_37 = arith.constant 0 : index
      %c0_38 = arith.constant 0 : index
      %83 = vector.load %arg12[%c0_37, %c0_38] : memref<64x1xf32, #tpu.memory_space<vmem>>, vector<64x1xf32>
      tpu.vector_store %arg12[%c0_37, %c0_38], %82 {strides = array<i32>} : memref<64x1xf32, #tpu.memory_space<vmem>>, vector<64x1xf32>,
      %c0_39 = arith.constant 0 : index
      %c0_40 = arith.constant 0 : index
      %84 = vector.load %arg11[%c0_39, %c0_40] : memref<64x1xf32, #tpu.memory_space<vmem>>, vector<64x1xf32>
      tpu.vector_store %arg11[%c0_39, %c0_40], %72 {strides = array<i32>} : memref<64x1xf32, #tpu.memory_space<vmem>>, vector<64x1xf32>,
      %c0_41 = arith.constant 0 : index
      %c0_42 = arith.constant 0 : index
      %85 = vector.load %arg13[%c0_41, %c0_42] : memref<64x1xf32, #tpu.memory_space<vmem>>, vector<64x1xf32>
      %cst_43 = arith.constant dense<0xFF800000> : vector<64xf32>
      %86 = vector.multi_reduction <maximumf>, %67, %cst_43 [1] : vector<64x64xf32> to vector<64xf32>
      %87 = vector.shape_cast %86 : vector<64xf32> to vector<64x1xf32>
      %88 = arith.maximumf %85, %87 : vector<64x1xf32>
      %c0_44 = arith.constant 0 : index
      %c0_45 = arith.constant 0 : index
      %89 = vector.load %arg14[%c0_44, %c0_45] : memref<64x1xf32, #tpu.memory_space<vmem>>, vector<64x1xf32>
      %c0_46 = arith.constant 0 : index
      %c0_47 = arith.constant 0 : index
      %90 = vector.load %arg13[%c0_46, %c0_47] : memref<64x1xf32, #tpu.memory_space<vmem>>, vector<64x1xf32>
      %91 = arith.subf %90, %88 : vector<64x1xf32>
      %92 = math.exp %91 : vector<64x1xf32>
      %93 = arith.mulf %89, %92 : vector<64x1xf32>
      %94 = vector.broadcast %88 : vector<64x1xf32> to vector<64x64xf32>
      %95 = arith.subf %67, %94 : vector<64x64xf32>
      %96 = math.exp %95 : vector<64x64xf32>
      %cst_48 = arith.constant dense<0.000000e+00> : vector<64x1xf32>
      %97 = tpu.matmul %96, %68, %cst_48 {dimension_numbers = #tpu.dot_dimension_numbers<[1], [0], [0], [1], [0, 0, 1, 1], [], []>} : vector<64x64xf32>, vector<64x1xf32>, vector<64x1xf32> -> vector<64x1xf32>
      %98 = arith.addf %93, %97 : vector<64x1xf32>
      %c0_49 = arith.constant 0 : index
      %c0_50 = arith.constant 0 : index
      %99 = vector.load %arg14[%c0_49, %c0_50] : memref<64x1xf32, #tpu.memory_space<vmem>>, vector<64x1xf32>
      tpu.vector_store %arg14[%c0_49, %c0_50], %98 {strides = array<i32>} : memref<64x1xf32, #tpu.memory_space<vmem>>, vector<64x1xf32>,
      %c0_51 = arith.constant 0 : index
      %c0_52 = arith.constant 0 : index
      %100 = vector.load %arg13[%c0_51, %c0_52] : memref<64x1xf32, #tpu.memory_space<vmem>>, vector<64x1xf32>
      tpu.vector_store %arg13[%c0_51, %c0_52], %88 {strides = array<i32>} : memref<64x1xf32, #tpu.memory_space<vmem>>, vector<64x1xf32>,
      %c0_53 = arith.constant 0 : index
      %c0_54 = arith.constant 0 : index
      %101 = vector.load %arg8[%c0_53, %c0_54] : memref<64x2xf32, #tpu.memory_space<vmem>>, vector<64x2xf32>
      %cst_55 = arith.constant 1.000000e+00 : f32
      %cst_56 = arith.constant 0.000000e+00 : f32
      %102 = vector.broadcast %cst_55 : f32 to vector<64x64xf32>
      %103 = vector.broadcast %cst_56 : f32 to vector<64x64xf32>
      %104 = arith.select %49, %102, %103 : vector<64x64xi1>, vector<64x64xf32>
      %cst_57 = arith.constant dense<0.000000e+00> : vector<64x1xf32>
      %105 = tpu.matmul %104, %68, %cst_57 {dimension_numbers = #tpu.dot_dimension_numbers<[1], [0], [0], [1], [0, 0, 1, 1], [], []>} : vector<64x64xf32>, vector<64x1xf32>, vector<64x1xf32> -> vector<64x1xf32>
      %cst_58 = arith.constant 1.000000e+00 : f32
      %cst_59 = arith.constant 0.000000e+00 : f32
      %106 = vector.broadcast %cst_58 : f32 to vector<64x64xf32>
      %107 = vector.broadcast %cst_59 : f32 to vector<64x64xf32>
      %108 = arith.select %55, %106, %107 : vector<64x64xi1>, vector<64x64xf32>
      %cst_60 = arith.constant dense<0.000000e+00> : vector<64x1xf32>
      %109 = tpu.matmul %108, %68, %cst_60 {dimension_numbers = #tpu.dot_dimension_numbers<[1], [0], [0], [1], [0, 0, 1, 1], [], []>} : vector<64x64xf32>, vector<64x1xf32>, vector<64x1xf32> -> vector<64x1xf32>
      %110 = tpu.concatenate %105, %109 in 1 : vector<64x1xf32>, vector<64x1xf32> -> vector<64x2xf32>
      %111 = arith.addf %101, %110 : vector<64x2xf32>
      %c0_61 = arith.constant 0 : index
      %c0_62 = arith.constant 0 : index
      %112 = vector.load %arg8[%c0_61, %c0_62] : memref<64x2xf32, #tpu.memory_space<vmem>>, vector<64x2xf32>
      tpu.vector_store %arg8[%c0_61, %c0_62], %111 {strides = array<i32>} : memref<64x2xf32, #tpu.memory_space<vmem>>, vector<64x2xf32>,
      %c0_i32_63 = arith.constant 0 : i32
      %113 = arith.cmpi eq, %arg2, %c0_i32_63 : i32
      %114 = arith.extui %113 : i1 to i32
      %c0_i32_64 = arith.constant 0 : i32
      %115 = arith.cmpi ne, %114, %c0_i32_64 : i32
      scf.if %115 {
        %c0_65 = arith.constant 0 : index
        %c0_66 = arith.constant 0 : index
        %116 = vector.load %arg11[%c0_65, %c0_66] : memref<64x1xf32, #tpu.memory_space<vmem>>, vector<64x1xf32>
        %c0_67 = arith.constant 0 : index
        %c0_68 = arith.constant 0 : index
        %117 = vector.load %arg12[%c0_67, %c0_68] : memref<64x1xf32, #tpu.memory_space<vmem>>, vector<64x1xf32>
        %118 = math.log %117 : vector<64x1xf32>
        %119 = arith.addf %116, %118 : vector<64x1xf32>
        %cst_69 = arith.constant 5.000000e-01 : f32
        %120 = vector.broadcast %cst_69 : f32 to vector<64x1xf32>
        %121 = arith.mulf %120, %119 : vector<64x1xf32>
        %c0_70 = arith.constant 0 : index
        %c0_71 = arith.constant 0 : index
        %122 = vector.load %arg13[%c0_70, %c0_71] : memref<64x1xf32, #tpu.memory_space<vmem>>, vector<64x1xf32>
        %c0_72 = arith.constant 0 : index
        %c0_73 = arith.constant 0 : index
        %123 = vector.load %arg14[%c0_72, %c0_73] : memref<64x1xf32, #tpu.memory_space<vmem>>, vector<64x1xf32>
        %124 = math.log %123 : vector<64x1xf32>
        %125 = arith.addf %122, %124 : vector<64x1xf32>
        %cst_74 = arith.constant 2.000000e-02 : f32
        %126 = vector.broadcast %cst_74 : f32 to vector<64x1xf32>
        %127 = arith.mulf %126, %125 : vector<64x1xf32>
        %128 = arith.addf %121, %127 : vector<64x1xf32>
        %c0_75 = arith.constant 0 : index
        %c0_76 = arith.constant 0 : index
        %129 = vector.load %arg7[%c0_75, %c0_76] : memref<64x1xf32, #tpu.memory_space<vmem>>, vector<64x1xf32>
        tpu.vector_store %arg7[%c0_75, %c0_76], %128 {strides = array<i32>} : memref<64x1xf32, #tpu.memory_space<vmem>>, vector<64x1xf32>,
      } else {
      }
    } else {
    }
    return
  }
  func.func @transform_0(%arg0: i32, %arg1: i32, %arg2: i32) -> (i32, i32) {
    %c0_i32 = arith.constant 0 : i32
    %c0_i32_0 = arith.constant 0 : i32
    return %arg0, %c0_i32 : i32, i32
  }
  func.func @transform_1(%arg0: i32, %arg1: i32, %arg2: i32) -> (i32, i32) {
    %c0_i32 = arith.constant 0 : i32
    %c0_i32_0 = arith.constant 0 : i32
    return %arg2, %c0_i32 : i32, i32
  }
  func.func @transform_2(%arg0: i32, %arg1: i32, %arg2: i32) -> (i32, i32) {
    %c0_i32 = arith.constant 0 : i32
    %c0_i32_0 = arith.constant 0 : i32
    return %arg0, %c0_i32 : i32, i32
  }
  func.func @transform_3(%arg0: i32, %arg1: i32, %arg2: i32) -> (i32, i32) {
    %c0_i32 = arith.constant 0 : i32
    %c0_i32_0 = arith.constant 0 : i32
    return %c0_i32, %arg2 : i32, i32
  }
  func.func @transform_4(%arg0: i32, %arg1: i32, %arg2: i32) -> (i32, i32) {
    %c0_i32 = arith.constant 0 : i32
    %c0_i32_0 = arith.constant 0 : i32
    return %arg0, %c0_i32 : i32, i32
  }
  func.func @transform_5(%arg0: i32, %arg1: i32, %arg2: i32) -> (i32, i32) {
    %c0_i32 = arith.constant 0 : i32
    %c0_i32_0 = arith.constant 0 : i32
    return %arg0, %c0_i32 : i32, i32
  }
}

</mosaic_0001>

<llo_original>
// kernel: multi_similarity_loss.1
$region0: #{multi_similarity_loss.1}
  #allocation0 [shape = 'u32[]', space=smem, size = 0x4, offset = 0x4, fixed_abs, tag = 'smem constant byte address 0x4 - core index']
  #allocation1 [shape = 'u32[144,128]{1,0:T(1,128)}', space=vmem, size = 0x12000, scoped, tag = 'internal scratch']
  #allocation2 [shape = 'f32[64,1]{1,0:T(8,128)}', space=vmem, size = 0x8000, scoped, tag = 'scratch operand']
  #allocation3 [shape = 'f32[64,1]{1,0:T(8,128)}', space=vmem, size = 0x8000, scoped, tag = 'scratch operand']
  #allocation4 [shape = 'f32[64,1]{1,0:T(8,128)}', space=vmem, size = 0x8000, scoped, tag = 'scratch operand']
  #allocation5 [shape = 'f32[64,1]{1,0:T(8,128)}', space=vmem, size = 0x8000, scoped, tag = 'scratch operand']
  #allocation6 [shape = 'f32[64,1]{1,0:T(8,128)}', space=vmem, size = 0x8000, scoped, tag = 'scratch operand']
  #allocation7 [shape = 'f32[64,1]{1,0:T(8,128)}', space=vmem, size = 0x8000, scoped, tag = 'scratch operand']
  %s0 = inlined_call_operand.vmem [shape: f32[64,128], index: 0, kind: input, shape index: {}, may-alias: {0,1}]
  %s1 = inlined_call_operand.vmem [shape: f32[64,128], index: 1, kind: input, shape index: {}, may-alias: {0,1}]
  %s2 = inlined_call_operand.vmem [shape: s32[64,1], index: 2, kind: input, shape index: {}]
  %s3 = inlined_call_operand.vmem [shape: s32[1,64], index: 3, kind: input, shape index: {}]
  %s4 = inlined_call_operand.vmem [shape: f32[64,1], index: 4, kind: output, shape index: {0}]
  %s5 = inlined_call_operand.vmem [shape: f32[64,2], index: 5, kind: output, shape index: {1}]
  %6 = xla_tuple %s4, %s5
  %s7 = sld [smem:[#allocation0]]
  $region77: #{multi_similarity_loss.1} parent=0
    _
  %s9 = ssub.s32 1, %s7
  %s10 = scalar_select 0, %s9, %s7
  loop: start=0, step=1, limit=4
  $region2: #{multi_similarity_loss.1} parent=0 // loop_pre_header
    _
  $region3: #{multi_similarity_loss.1} parent=0 // loop_header
    %s12 = sphi 0, %s16
    %p13 = scmp.ge.s32.totalorder %s12, 4
    %s19 = sphi 0, %s38
    %s20 = sphi 0, %s34
    %s21 = sphi 0, %s30
    %s22 = sphi 0, %s19
    %s23 = sphi 0, %s20
    %s24 = sphi 0, %s21
    %s25 = sphi 0, %s22
    %s26 = sphi 0, %s23
    %s27 = sphi 0, %s24
    %s41 = sphi 0, %s43
    %s44 = sphi 0, %s41
    %s45 = sphi 0, %s44
    %s61 = sphi 0, %s45
    %s67 = sphi 0, %s69
    %s70 = sphi 0, %s67
    %s71 = sphi 0, %s70
    %s87 = sphi 0, %s71
    %s93 = sphi 0, %s95
    %s96 = sphi 0, %s93
    %s97 = sphi 0, %s96
    %s113 = sphi 0, %s97
    %s119 = sphi 0, %s121
    %s122 = sphi 0, %s119
    %s123 = sphi 0, %s122
    %s139 = sphi 0, %s123
    %s145 = sphi 0, %s147
    %s148 = sphi 0, %s145
    %s149 = sphi 0, %s148
    %s165 = sphi 0, %s149
    %s171 = sphi 0, %s173
    %s174 = sphi 0, %s171
    %s175 = sphi 0, %s174
    %s191 = sphi 0, %s175
  $region4: #{multi_similarity_loss.1} parent=0 // loop_header_branch
    %15 = sbr.rel (%p13) target = $region8
  $region5: #{multi_similarity_loss.1} parent=0 // loop_body
    %s17 = ssub.s32 %s12, 1
    %s18 = ssub.s32 %s12, 2
    %s28 = sadd.s32 1, %s21
    %p29 = scmp.ge.s32.totalorder %s28, 1
    %s30 = scalar_select %p29, 0, %s28
    %s31 = sadd.s32 1, %s20
    %s32 = scalar_select %p29, %s31, %s20
    %p33 = scmp.ge.s32.totalorder %s32, 2
    %s34 = scalar_select %p33, 0, %s32
    %s35 = sadd.s32 1, %s19
    %s36 = scalar_select %p33, %s35, %s19
    %p37 = scmp.ge.s32.totalorder %s36, 1
    %s38 = scalar_select %p37, 0, %s36
    %s39 = ssub.s32 %s19, %s38
    %p40 = scmp.eq.s32.totalorder %s39, 0
    %s42 = sadd.s32 %s41, 1
    %s43 = scalar_select %p40, %s41, %s42
    %p46 = pneg %p40
    %p47 = scmp.eq.s32.totalorder %s12, 1
    %p48 = por %p46, %p47
    %p49 = scmp.ne.s32.totalorder %s41, %s44
    %p50 = scmp.eq.s32.totalorder %s12, 0
    %p51 = por %p49, %p50
    %p52 = scmp.ne.s32.totalorder %s41, %s44
    %p53 = scmp.eq.s32.totalorder %s17, 1
    %p54 = por %p52, %p53
    %p55 = scmp.ne.s32.totalorder %s44, %s45
    %p56 = scmp.eq.s32.totalorder %s17, 0
    %p57 = por %p55, %p56
    %p58 = scmp.ne.s32.totalorder %s44, %s45
    %p59 = scmp.eq.s32.totalorder %s18, 1
    %p60 = por %p58, %p59
    %p62 = scmp.ne.s32.totalorder %s45, %s61
    %p63 = scmp.eq.s32.totalorder %s18, 0
    %p64 = por %p62, %p63
    %s65 = ssub.s32 %s21, %s30
    %p66 = scmp.eq.s32.totalorder %s65, 0
    %s68 = sadd.s32 %s67, 1
    %s69 = scalar_select %p66, %s67, %s68
    %p72 = pneg %p66
    %p73 = scmp.eq.s32.totalorder %s12, 1
    %p74 = por %p72, %p73
    %p75 = scmp.ne.s32.totalorder %s67, %s70
    %p76 = scmp.eq.s32.totalorder %s12, 0
    %p77 = por %p75, %p76
    %p78 = scmp.ne.s32.totalorder %s67, %s70
    %p79 = scmp.eq.s32.totalorder %s17, 1
    %p80 = por %p78, %p79
    %p81 = scmp.ne.s32.totalorder %s70, %s71
    %p82 = scmp.eq.s32.totalorder %s17, 0
    %p83 = por %p81, %p82
    %p84 = scmp.ne.s32.totalorder %s70, %s71
    %p85 = scmp.eq.s32.totalorder %s18, 1
    %p86 = por %p84, %p85
    %p88 = scmp.ne.s32.totalorder %s71, %s87
    %p89 = scmp.eq.s32.totalorder %s18, 0
    %p90 = por %p88, %p89
    %s91 = ssub.s32 %s19, %s38
    %p92 = scmp.eq.s32.totalorder %s91, 0
    %s94 = sadd.s32 %s93, 1
    %s95 = scalar_select %p92, %s93, %s94
    %p98 = pneg %p92
    %p99 = scmp.eq.s32.totalorder %s12, 1
    %p100 = por %p98, %p99
    %p101 = scmp.ne.s32.totalorder %s93, %s96
    %p102 = scmp.eq.s32.totalorder %s12, 0
    %p103 = por %p101, %p102
    %p104 = scmp.ne.s32.totalorder %s93, %s96
    %p105 = scmp.eq.s32.totalorder %s17, 1
    %p106 = por %p104, %p105
    %p107 = scmp.ne.s32.totalorder %s96, %s97
    %p108 = scmp.eq.s32.totalorder %s17, 0
    %p109 = por %p107, %p108
    %p110 = scmp.ne.s32.totalorder %s96, %s97
    %p111 = scmp.eq.s32.totalorder %s18, 1
    %p112 = por %p110, %p111
    %p114 = scmp.ne.s32.totalorder %s97, %s113
    %p115 = scmp.eq.s32.totalorder %s18, 0
    %p116 = por %p114, %p115
    %s117 = ssub.s32 %s21, %s30
    %p118 = scmp.eq.s32.totalorder %s117, 0
    %s120 = sadd.s32 %s119, 1
    %s121 = scalar_select %p118, %s119, %s120
    %p124 = pneg %p118
    %p125 = scmp.eq.s32.totalorder %s12, 1
    %p126 = por %p124, %p125
    %p127 = scmp.ne.s32.totalorder %s119, %s122
    %p128 = scmp.eq.s32.totalorder %s12, 0
    %p129 = por %p127, %p128
    %p130 = scmp.ne.s32.totalorder %s119, %s122
    %p131 = scmp.eq.s32.totalorder %s17, 1
    %p132 = por %p130, %p131
    %p133 = scmp.ne.s32.totalorder %s122, %s123
    %p134 = scmp.eq.s32.totalorder %s17, 0
    %p135 = por %p133, %p134
    %p136 = scmp.ne.s32.totalorder %s122, %s123
    %p137 = scmp.eq.s32.totalorder %s18, 1
    %p138 = por %p136, %p137
    %p140 = scmp.ne.s32.totalorder %s123, %s139
    %p141 = scmp.eq.s32.totalorder %s18, 0
    %p142 = por %p140, %p141
    %s143 = ssub.s32 %s19, %s38
    %p144 = scmp.eq.s32.totalorder %s143, 0
    %s146 = sadd.s32 %s145, 1
    %s147 = scalar_select %p144, %s145, %s146
    %p150 = pneg %p144
    %p151 = scmp.eq.s32.totalorder %s12, 1
    %p152 = por %p150, %p151
    %p153 = scmp.ne.s32.totalorder %s145, %s148
    %p154 = scmp.eq.s32.totalorder %s12, 0
    %p155 = por %p153, %p154
    %p156 = scmp.ne.s32.totalorder %s145, %s148
    %p157 = scmp.eq.s32.totalorder %s17, 1
    %p158 = por %p156, %p157
    %p159 = scmp.ne.s32.totalorder %s148, %s149
    %p160 = scmp.eq.s32.totalorder %s17, 0
    %p161 = por %p159, %p160
    %p162 = scmp.ne.s32.totalorder %s148, %s149
    %p163 = scmp.eq.s32.totalorder %s18, 1
    %p164 = por %p162, %p163
    %p166 = scmp.ne.s32.totalorder %s149, %s165
    %p167 = scmp.eq.s32.totalorder %s18, 0
    %p168 = por %p166, %p167
    %s169 = ssub.s32 %s19, %s38
    %p170 = scmp.eq.s32.totalorder %s169, 0
    %s172 = sadd.s32 %s171, 1
    %s173 = scalar_select %p170, %s171, %s172
    %p176 = pneg %p170
    %p177 = scmp.eq.s32.totalorder %s12, 1
    %p178 = por %p176, %p177
    %p179 = scmp.ne.s32.totalorder %s171, %s174
    %p180 = scmp.eq.s32.totalorder %s12, 0
    %p181 = por %p179, %p180
    %p182 = scmp.ne.s32.totalorder %s171, %s174
    %p183 = scmp.eq.s32.totalorder %s17, 1
    %p184 = por %p182, %p183
    %p185 = scmp.ne.s32.totalorder %s174, %s175
    %p186 = scmp.eq.s32.totalorder %s17, 0
    %p187 = por %p185, %p186
    %p188 = scmp.ne.s32.totalorder %s174, %s175
    %p189 = scmp.eq.s32.totalorder %s18, 1
    %p190 = por %p188, %p189
    %p192 = scmp.ne.s32.totalorder %s175, %s191
    %p193 = scmp.eq.s32.totalorder %s18, 0
    %p194 = por %p192, %p193
    %p195 = scmp.le.s32.totalorder 1, %s12
    %p196 = scmp.lt.s32.totalorder %s12, 3
    %p197 = pnand %p195, %p196
    %p198 = pneg %p197
    // Predicated region
    $region9: #{multi_similarity_loss.1} parent=5 // pred_check
      _
    $region10: #{multi_similarity_loss.1} parent=5 // pred_check_branch
      %200 = sbr.rel (%p197) target = $region12
    $region11: #{multi_similarity_loss.1} parent=5 // pred_region
      %s201 = ssub.s32 %s12, 1
      // Predicated region
      $region13: #{multi_similarity_loss.1} parent=11 // pred_check
        %p202 = pneg %p57
      $region14: #{multi_similarity_loss.1} parent=11 // pred_check_branch
        %204 = sbr.rel (%p202) target = $region16
      $region15: #{multi_similarity_loss.1} parent=11 // pred_region
        %s205 = smul.u32 8, %s22
        %p206 = scmp.lt.s32.totalorder %s205, 7
        %s207 = scalar_select %p206, %s205, 7
        %s208 = smul.addr %s207, 8
        %s209 = scalar_lea.vmem %s0, %s208
        %s210 = smul.u32 8, %s22
      $region16: #{multi_similarity_loss.1} parent=11 // pred_fallthru
        _
      // Predicated region
      $region17: #{multi_similarity_loss.1} parent=11 // pred_check
        %p211 = pneg %p83
      $region18: #{multi_similarity_loss.1} parent=11 // pred_check_branch
        %213 = sbr.rel (%p211) target = $region20
      $region19: #{multi_similarity_loss.1} parent=11 // pred_region
        %s214 = smul.u32 8, %s24
        %p215 = scmp.lt.s32.totalorder %s214, 7
        %s216 = scalar_select %p215, %s214, 7
        %s217 = smul.addr %s216, 8
        %s218 = scalar_lea.vmem %s1, %s217
        %s219 = smul.u32 8, %s24
      $region20: #{multi_similarity_loss.1} parent=11 // pred_fallthru
        _
      // Predicated region
      $region21: #{multi_similarity_loss.1} parent=11 // pred_check
        %p220 = pneg %p109
      $region22: #{multi_similarity_loss.1} parent=11 // pred_check_branch
        %222 = sbr.rel (%p220) target = $region24
      $region23: #{multi_similarity_loss.1} parent=11 // pred_region
        %s223 = smul.u32 8, %s22
        %p224 = scmp.lt.s32.totalorder %s223, 7
        %s225 = scalar_select %p224, %s223, 7
        %s226 = smul.addr %s225, 8
        %s227 = scalar_lea.vmem %s2, %s226
        %s228 = smul.u32 8, %s22
      $region24: #{multi_similarity_loss.1} parent=11 // pred_fallthru
        _
      // Predicated region
      $region25: #{multi_similarity_loss.1} parent=11 // pred_check
        %p229 = pneg %p135
      $region26: #{multi_similarity_loss.1} parent=11 // pred_check_branch
        %231 = sbr.rel (%p229) target = $region28
      $region27: #{multi_similarity_loss.1} parent=11 // pred_region
        %p232 = scmp.lt.s32.totalorder %s24, 0
        %s233 = scalar_select %p232, %s24, 0
        %s234 = scalar_lea.vmem %s3, %s233
      $region28: #{multi_similarity_loss.1} parent=11 // pred_fallthru
        _
    $region12: #{multi_similarity_loss.1} parent=5 // pred_fallthru
      _
    %p235 = scmp.lt.s32.totalorder %s12, 2
    // Predicated region
    $region29: #{multi_similarity_loss.1} parent=5 // pred_check
      %p236 = pneg %p235
    $region30: #{multi_similarity_loss.1} parent=5 // pred_check_branch
      %238 = sbr.rel (%p236) target = $region32
    $region31: #{multi_similarity_loss.1} parent=5 // pred_region
      _
    $region32: #{multi_similarity_loss.1} parent=5 // pred_fallthru
      _
    %p239 = scmp.le.s32.totalorder 1, %s12
    %p240 = scmp.lt.s32.totalorder %s12, 3
    %p241 = pnand %p239, %p240
    %p242 = pneg %p241
    // Predicated region
    $region33: #{multi_similarity_loss.1} parent=5 // pred_check
      _
    $region34: #{multi_similarity_loss.1} parent=5 // pred_check_branch
      %244 = sbr.rel (%p241) target = $region36
    $region35: #{multi_similarity_loss.1} parent=5 // pred_region
      %s245 = ssub.s32 %s12, 1
      %s246 = smul.u32 8, %s22
      %p247 = scmp.lt.s32.totalorder %s246, 7
      %s248 = scalar_select %p247, %s246, 7
      %s249 = smul.addr %s248, 8
      %s250 = scalar_lea.vmem %s0, %s249
      %p251 = pneg %p57
      %p252 = pneg %p54
      %s253 = smul.u32 8, %s24
      %p254 = scmp.lt.s32.totalorder %s253, 7
      %s255 = scalar_select %p254, %s253, 7
      %s256 = smul.addr %s255, 8
      %s257 = scalar_lea.vmem %s1, %s256
      %p258 = pneg %p83
      %p259 = pneg %p80
      %s260 = smul.u32 8, %s22
      %p261 = scmp.lt.s32.totalorder %s260, 7
      %s262 = scalar_select %p261, %s260, 7
      %s263 = smul.addr %s262, 8
      %s264 = scalar_lea.vmem %s2, %s263
      %p265 = pneg %p109
      %p266 = pneg %p106
      %p267 = scmp.lt.s32.totalorder %s24, 0
      %s268 = scalar_select %p267, %s24, 0
      %s269 = scalar_lea.vmem %s3, %s268
      %p270 = pneg %p135
      %p271 = pneg %p132
      %p272 = pneg %p161
      %p273 = pneg %p158
      %s274 = smul.u32 8, %s22
      %p275 = scmp.lt.s32.totalorder %s274, 7
      %s276 = scalar_select %p275, %s274, 7
      %s277 = smul.addr %s276, 8
      %s278 = scalar_lea.vmem %s4, %s277
      %p279 = pneg %p187
      %p280 = pneg %p184
      %s281 = smul.u32 8, %s22
      %p282 = scmp.lt.s32.totalorder %s281, 7
      %s283 = scalar_select %p282, %s281, 7
      %s284 = smul.addr %s283, 8
      %s285 = scalar_lea.vmem %s5, %s284
      %s286 = smul.u32 8, %s22
      %p287 = scmp.lt.s32.totalorder %s286, 7
      %s288 = scalar_select %p287, %s286, 7
      %s289 = smul.addr %s288, 8
      %s290 = scalar_lea.vmem %s0, %s289
      %s291 = smul.u32 8, %s22
      %s292 = smul.u32 8, %s24
      %p293 = scmp.lt.s32.totalorder %s292, 7
      %s294 = scalar_select %p293, %s292, 7
      %s295 = smul.addr %s294, 8
      %s296 = scalar_lea.vmem %s1, %s295
      %s297 = smul.u32 8, %s24
      %s298 = smul.u32 8, %s22
      %p299 = scmp.lt.s32.totalorder %s298, 7
      %s300 = scalar_select %p299, %s298, 7
      %s301 = smul.addr %s300, 8
      %s302 = scalar_lea.vmem %s2, %s301
      %s303 = smul.u32 8, %s22
      %p304 = scmp.lt.s32.totalorder %s24, 0
      %s305 = scalar_select %p304, %s24, 0
      %s306 = scalar_lea.vmem %s3, %s305
      %s307 = smul.u32 8, %s22
      %p308 = scmp.lt.s32.totalorder %s307, 7
      %s309 = scalar_select %p308, %s307, 7
      %s310 = smul.addr %s309, 8
      %s311 = scalar_lea.vmem %s4, %s310
      %s312 = smul.u32 8, %s22
      %s313 = smul.u32 8, %s22
      %p314 = scmp.lt.s32.totalorder %s313, 7
      %s315 = scalar_select %p314, %s313, 7
      %s316 = smul.addr %s315, 8
      %s317 = scalar_lea.vmem %s5, %s316
      %s318 = smul.u32 8, %s22
      %v319 = vld [vmem:[%s290] sm:$0xff]
      %v320 = vld [vmem:[%s290 + $0x8] sm:$0xff]
      %v321 = vld [vmem:[%s290 + $0x10] sm:$0xff]
      %v322 = vld [vmem:[%s290 + $0x18] sm:$0xff]
      %v323 = vld [vmem:[%s290 + $0x20] sm:$0xff]
      %v324 = vld [vmem:[%s290 + $0x28] sm:$0xff]
      %v325 = vld [vmem:[%s290 + $0x30] sm:$0xff]
      %v326 = vld [vmem:[%s290 + $0x38] sm:$0xff]
      %v327 = vld [vmem:[%s296] sm:$0xff]
      %v328 = vld [vmem:[%s296 + $0x8] sm:$0xff]
      %v329 = vld [vmem:[%s296 + $0x10] sm:$0xff]
      %v330 = vld [vmem:[%s296 + $0x18] sm:$0xff]
      %v331 = vld [vmem:[%s296 + $0x20] sm:$0xff]
      %v332 = vld [vmem:[%s296 + $0x28] sm:$0xff]
      %v333 = vld [vmem:[%s296 + $0x30] sm:$0xff]
      %v334 = vld [vmem:[%s296 + $0x38] sm:$0xff]
      %v335 = vmul.f32 %v319, %v319
      %v336 = vmul.f32 %v320, %v320
      %v337 = vmul.f32 %v321, %v321
      %v338 = vmul.f32 %v322, %v322
      %v339 = vmul.f32 %v323, %v323
      %v340 = vmul.f32 %v324, %v324
      %v341 = vmul.f32 %v325, %v325
      %v342 = vmul.f32 %v326, %v326
      %343 = vadd.xlane.f32.xlu0 %v335
      %v344 = vpop.xlane.xlu0 %343
      %345 = vadd.xlane.f32.xlu0 %v336
      %v346 = vpop.xlane.xlu0 %345
      %347 = vadd.xlane.f32.xlu0 %v337
      %v348 = vpop.xlane.xlu0 %347
      %349 = vadd.xlane.f32.xlu0 %v338
      %v350 = vpop.xlane.xlu0 %349
      %351 = vadd.xlane.f32.xlu0 %v339
      %v352 = vpop.xlane.xlu0 %351
      %353 = vadd.xlane.f32.xlu0 %v340
      %v354 = vpop.xlane.xlu0 %353
      %355 = vadd.xlane.f32.xlu0 %v341
      %v356 = vpop.xlane.xlu0 %355
      %357 = vadd.xlane.f32.xlu0 %v342
      %v358 = vpop.xlane.xlu0 %357
      %v359 = vrsqrt.pop %v344
      %v360 = vmul.f32 %v344, %v359
      %vm361 = vcmp.eq.f32.partialorder %v344, inf
      %v362 = vsel %vm361, %v344, %v360
      %vm363 = vcmp.eq.f32.partialorder %v344, 0.0
      %v364 = vand.u32 %v344, 2147483648
      %v365 = vsel %vm363, %v364, %v362
      %v366 = vrsqrt.pop %v346
      %v367 = vmul.f32 %v346, %v366
      %vm368 = vcmp.eq.f32.partialorder %v346, inf
      %v369 = vsel %vm368, %v346, %v367
      %vm370 = vcmp.eq.f32.partialorder %v346, 0.0
      %v371 = vand.u32 %v346, 2147483648
      %v372 = vsel %vm370, %v371, %v369
      %v373 = vrsqrt.pop %v348
      %v374 = vmul.f32 %v348, %v373
      %vm375 = vcmp.eq.f32.partialorder %v348, inf
      %v376 = vsel %vm375, %v348, %v374
      %vm377 = vcmp.eq.f32.partialorder %v348, 0.0
      %v378 = vand.u32 %v348, 2147483648
      %v379 = vsel %vm377, %v378, %v376
      %v380 = vrsqrt.pop %v350
      %v381 = vmul.f32 %v350, %v380
      %vm382 = vcmp.eq.f32.partialorder %v350, inf
      %v383 = vsel %vm382, %v350, %v381
      %vm384 = vcmp.eq.f32.partialorder %v350, 0.0
      %v385 = vand.u32 %v350, 2147483648
      %v386 = vsel %vm384, %v385, %v383
      %v387 = vrsqrt.pop %v352
      %v388 = vmul.f32 %v352, %v387
      %vm389 = vcmp.eq.f32.partialorder %v352, inf
      %v390 = vsel %vm389, %v352, %v388
      %vm391 = vcmp.eq.f32.partialorder %v352, 0.0
      %v392 = vand.u32 %v352, 2147483648
      %v393 = vsel %vm391, %v392, %v390
      %v394 = vrsqrt.pop %v354
      %v395 = vmul.f32 %v354, %v394
      %vm396 = vcmp.eq.f32.partialorder %v354, inf
      %v397 = vsel %vm396, %v354, %v395
      %vm398 = vcmp.eq.f32.partialorder %v354, 0.0
      %v399 = vand.u32 %v354, 2147483648
      %v400 = vsel %vm398, %v399, %v397
      %v401 = vrsqrt.pop %v356
      %v402 = vmul.f32 %v356, %v401
      %vm403 = vcmp.eq.f32.partialorder %v356, inf
      %v404 = vsel %vm403, %v356, %v402
      %vm405 = vcmp.eq.f32.partialorder %v356, 0.0
      %v406 = vand.u32 %v356, 2147483648
      %v407 = vsel %vm405, %v406, %v404
      %v408 = vrsqrt.pop %v358
      %v409 = vmul.f32 %v358, %v408
      %vm410 = vcmp.eq.f32.partialorder %v358, inf
      %v411 = vsel %vm410, %v358, %v409
      %vm412 = vcmp.eq.f32.partialorder %v358, 0.0
      %v413 = vand.u32 %v358, 2147483648
      %v414 = vsel %vm412, %v413, %v411
      %v415 = vmax.f32 %v365, 1e-12
      %v416 = vmax.f32 %v372, 1e-12
      %v417 = vmax.f32 %v379, 1e-12
      %v418 = vmax.f32 %v386, 1e-12
      %v419 = vmax.f32 %v393, 1e-12
      %v420 = vmax.f32 %v400, 1e-12
      %v421 = vmax.f32 %v407, 1e-12
      %v422 = vmax.f32 %v414, 1e-12
      %v423 = vrcp.pop %v415
      %v424 = vmul.f32 %v319, %v423
      %v425 = vrcp.pop %v416
      %v426 = vmul.f32 %v320, %v425
      %v427 = vrcp.pop %v417
      %v428 = vmul.f32 %v321, %v427
      %v429 = vrcp.pop %v418
      %v430 = vmul.f32 %v322, %v429
      %v431 = vrcp.pop %v419
      %v432 = vmul.f32 %v323, %v431
      %v433 = vrcp.pop %v420
      %v434 = vmul.f32 %v324, %v433
      %v435 = vrcp.pop %v421
      %v436 = vmul.f32 %v325, %v435
      %v437 = vrcp.pop %v422
      %v438 = vmul.f32 %v326, %v437
      %v439 = vmul.f32 %v327, %v327
      %v440 = vmul.f32 %v328, %v328
      %v441 = vmul.f32 %v329, %v329
      %v442 = vmul.f32 %v330, %v330
      %v443 = vmul.f32 %v331, %v331
      %v444 = vmul.f32 %v332, %v332
      %v445 = vmul.f32 %v333, %v333
      %v446 = vmul.f32 %v334, %v334
      %447 = vadd.xlane.f32.xlu0 %v439
      %v448 = vpop.xlane.xlu0 %447
      %449 = vadd.xlane.f32.xlu0 %v440
      %v450 = vpop.xlane.xlu0 %449
      %451 = vadd.xlane.f32.xlu0 %v441
      %v452 = vpop.xlane.xlu0 %451
      %453 = vadd.xlane.f32.xlu0 %v442
      %v454 = vpop.xlane.xlu0 %453
      %455 = vadd.xlane.f32.xlu0 %v443
      %v456 = vpop.xlane.xlu0 %455
      %457 = vadd.xlane.f32.xlu0 %v444
      %v458 = vpop.xlane.xlu0 %457
      %459 = vadd.xlane.f32.xlu0 %v445
      %v460 = vpop.xlane.xlu0 %459
      %461 = vadd.xlane.f32.xlu0 %v446
      %v462 = vpop.xlane.xlu0 %461
      %v463 = vrsqrt.pop %v448
      %v464 = vmul.f32 %v448, %v463
      %vm465 = vcmp.eq.f32.partialorder %v448, inf
      %v466 = vsel %vm465, %v448, %v464
      %vm467 = vcmp.eq.f32.partialorder %v448, 0.0
      %v468 = vand.u32 %v448, 2147483648
      %v469 = vsel %vm467, %v468, %v466
      %v470 = vrsqrt.pop %v450
      %v471 = vmul.f32 %v450, %v470
      %vm472 = vcmp.eq.f32.partialorder %v450, inf
      %v473 = vsel %vm472, %v450, %v471
      %vm474 = vcmp.eq.f32.partialorder %v450, 0.0
      %v475 = vand.u32 %v450, 2147483648
      %v476 = vsel %vm474, %v475, %v473
      %v477 = vrsqrt.pop %v452
      %v478 = vmul.f32 %v452, %v477
      %vm479 = vcmp.eq.f32.partialorder %v452, inf
      %v480 = vsel %vm479, %v452, %v478
      %vm481 = vcmp.eq.f32.partialorder %v452, 0.0
      %v482 = vand.u32 %v452, 2147483648
      %v483 = vsel %vm481, %v482, %v480
      %v484 = vrsqrt.pop %v454
      %v485 = vmul.f32 %v454, %v484
      %vm486 = vcmp.eq.f32.partialorder %v454, inf
      %v487 = vsel %vm486, %v454, %v485
      %vm488 = vcmp.eq.f32.partialorder %v454, 0.0
      %v489 = vand.u32 %v454, 2147483648
      %v490 = vsel %vm488, %v489, %v487
      %v491 = vrsqrt.pop %v456
      %v492 = vmul.f32 %v456, %v491
      %vm493 = vcmp.eq.f32.partialorder %v456, inf
      %v494 = vsel %vm493, %v456, %v492
      %vm495 = vcmp.eq.f32.partialorder %v456, 0.0
      %v496 = vand.u32 %v456, 2147483648
      %v497 = vsel %vm495, %v496, %v494
      %v498 = vrsqrt.pop %v458
      %v499 = vmul.f32 %v458, %v498
      %vm500 = vcmp.eq.f32.partialorder %v458, inf
      %v501 = vsel %vm500, %v458, %v499
      %vm502 = vcmp.eq.f32.partialorder %v458, 0.0
      %v503 = vand.u32 %v458, 2147483648
      %v504 = vsel %vm502, %v503, %v501
      %v505 = vrsqrt.pop %v460
      %v506 = vmul.f32 %v460, %v505
      %vm507 = vcmp.eq.f32.partialorder %v460, inf
      %v508 = vsel %vm507, %v460, %v506
      %vm509 = vcmp.eq.f32.partialorder %v460, 0.0
      %v510 = vand.u32 %v460, 2147483648
      %v511 = vsel %vm509, %v510, %v508
      %v512 = vrsqrt.pop %v462
      %v513 = vmul.f32 %v462, %v512
      %vm514 = vcmp.eq.f32.partialorder %v462, inf
      %v515 = vsel %vm514, %v462, %v513
      %vm516 = vcmp.eq.f32.partialorder %v462, 0.0
      %v517 = vand.u32 %v462, 2147483648
      %v518 = vsel %vm516, %v517, %v515
      %v519 = vmax.f32 %v469, 1e-12
      %v520 = vmax.f32 %v476, 1e-12
      %v521 = vmax.f32 %v483, 1e-12
      %v522 = vmax.f32 %v490, 1e-12
      %v523 = vmax.f32 %v497, 1e-12
      %v524 = vmax.f32 %v504, 1e-12
      %v525 = vmax.f32 %v511, 1e-12
      %v526 = vmax.f32 %v518, 1e-12
      %v527 = vrcp.pop %v519
      %v528 = vmul.f32 %v327, %v527
      %v529 = vrcp.pop %v520
      %v530 = vmul.f32 %v328, %v529
      %v531 = vrcp.pop %v521
      %v532 = vmul.f32 %v329, %v531
      %v533 = vrcp.pop %v522
      %v534 = vmul.f32 %v330, %v533
      %v535 = vrcp.pop %v523
      %v536 = vmul.f32 %v331, %v535
      %v537 = vrcp.pop %v524
      %v538 = vmul.f32 %v332, %v537
      %v539 = vrcp.pop %v525
      %v540 = vmul.f32 %v333, %v539
      %v541 = vrcp.pop %v526
      %v542 = vmul.f32 %v334, %v541
      %543 = vmatprep.subr.mxu0 0.0
      %544 = vmatpush1.xpose.msra.mxu0 %v528
      %545 = vmatprep.subr.mxu0 0.0
      %546 = vmatpush1.xpose.msra.mxu0 %v530
      %547 = vmatprep.subr.mxu0 0.0
      %548 = vmatpush1.xpose.msra.mxu0 %v532
      %549 = vmatprep.subr.mxu0 0.0
      %550 = vmatpush1.xpose.msra.mxu0 %v534
      %551 = vmatprep.subr.mxu0 0.0
      %552 = vmatpush1.xpose.msra.mxu0 %v536
      %553 = vmatprep.subr.mxu0 0.0
      %554 = vmatpush1.xpose.msra.mxu0 %v538
      %555 = vmatprep.subr.mxu0 0.0
      %556 = vmatpush1.xpose.msra.mxu0 %v540
      %557 = vmatprep.subr.mxu0 0.0
      %558 = vmatpush1.xpose.msra.mxu0 %v542
      %559 = vmatprep.subr.mxu0 0.0
      %560 = vmatpush1.xpose.msra.mxu0 0.0
      %561 = vmatprep.subr.mxu0 0.0
      %562 = vmatpush1.xpose.msra.mxu0 0.0
      %563 = vmatprep.subr.mxu0 0.0
      %564 = vmatpush1.xpose.msra.mxu0 0.0
      %565 = vmatprep.subr.mxu0 0.0
      %566 = vmatpush1.xpose.msra.mxu0 0.0
      %567 = vmatprep.subr.mxu0 0.0
      %568 = vmatpush1.xpose.msra.mxu0 0.0
      %569 = vmatprep.subr.mxu0 0.0
      %570 = vmatpush1.xpose.msra.mxu0 0.0
      %571 = vmatprep.subr.mxu0 0.0
      %572 = vmatpush1.xpose.msra.mxu0 0.0
      %573 = vmatprep.subr.mxu0 0.0
      %574 = vmatpush1.xpose.msra.mxu0 0.0
      %575 = vmatprep.subr.mxu0 0.0
      %576 = vmatpush1.xpose.msra.mxu0 0.0
      %577 = vmatprep.subr.mxu0 0.0
      %578 = vmatpush1.xpose.msra.mxu0 0.0
      %579 = vmatprep.subr.mxu0 0.0
      %580 = vmatpush1.xpose.msra.mxu0 0.0
      %581 = vmatprep.subr.mxu0 0.0
      %582 = vmatpush1.xpose.msra.mxu0 0.0
      %583 = vmatprep.subr.mxu0 0.0
      %584 = vmatpush1.xpose.msra.mxu0 0.0
      %585 = vmatprep.subr.mxu0 0.0
      %586 = vmatpush1.xpose.msra.mxu0 0.0
      %587 = vmatprep.subr.mxu0 0.0
      %588 = vmatpush1.xpose.msra.mxu0 0.0
      %589 = vmatprep.subr.mxu0 0.0
      %590 = vmatpush1.xpose.msra.mxu0 0.0
      %591 = vmatprep.subr.mxu0 0.0
      %592 = vmatpush1.xpose.msra.mxu0 0.0
      %593 = vmatprep.subr.mxu0 0.0
      %594 = vmatpush1.xpose.msra.mxu0 0.0
      %595 = vmatprep.subr.mxu0 0.0
      %596 = vmatpush1.xpose.msra.mxu0 0.0
      %597 = vmatprep.subr.mxu0 0.0
      %598 = vmatpush1.xpose.msra.mxu0 0.0
      %599 = vmatprep.subr.mxu0 0.0
      %600 = vmatpush1.xpose.msra.mxu0 0.0
      %601 = vmatprep.subr.mxu0 0.0
      %602 = vmatpush1.xpose.msra.mxu0 0.0
      %603 = vmatprep.subr.mxu0 0.0
      %604 = vmatpush1.xpose.msra.mxu0 0.0
      %605 = vmatprep.subr.mxu0 0.0
      %606 = vmatpush1.xpose.msra.mxu0 0.0
      %607 = vmatprep.mubr.f32.mxu0 0.0
      %608 = vmatmul.mubr.f32.gmra.mrb[0].mxu0 %v424
      %v609 = vpop.f32.mrb[0].mxu0
      %v610 = vadd.f32 0.0, %v609
      %v611 = vpop.f32.mrb[0].mxu0
      %612 = vmatprep.mubr.f32.mxu0 0.0
      %613 = vmatmul.mubr.f32.gmra.mrb[0].mxu0 %v426
      %v614 = vpop.f32.mrb[0].mxu0
      %v615 = vadd.f32 0.0, %v614
      %v616 = vpop.f32.mrb[0].mxu0
      %617 = vmatprep.mubr.f32.mxu0 0.0
      %618 = vmatmul.mubr.f32.gmra.mrb[0].mxu0 %v428
      %v619 = vpop.f32.mrb[0].mxu0
      %v620 = vadd.f32 0.0, %v619
      %v621 = vpop.f32.mrb[0].mxu0
      %622 = vmatprep.mubr.f32.mxu0 0.0
      %623 = vmatmul.mubr.f32.gmra.mrb[0].mxu0 %v430
      %v624 = vpop.f32.mrb[0].mxu0
      %v625 = vadd.f32 0.0, %v624
      %v626 = vpop.f32.mrb[0].mxu0
      %627 = vmatprep.mubr.f32.mxu0 0.0
      %628 = vmatmul.mubr.f32.gmra.mrb[0].mxu0 %v432
      %v629 = vpop.f32.mrb[0].mxu0
      %v630 = vadd.f32 0.0, %v629
      %v631 = vpop.f32.mrb[0].mxu0
      %632 = vmatprep.mubr.f32.mxu0 0.0
      %633 = vmatmul.mubr.f32.gmra.mrb[0].mxu0 %v434
      %v634 = vpop.f32.mrb[0].mxu0
      %v635 = vadd.f32 0.0, %v634
      %v636 = vpop.f32.mrb[0].mxu0
      %637 = vmatprep.mubr.f32.mxu0 0.0
      %638 = vmatmul.mubr.f32.gmra.mrb[0].mxu0 %v436
      %v639 = vpop.f32.mrb[0].mxu0
      %v640 = vadd.f32 0.0, %v639
      %v641 = vpop.f32.mrb[0].mxu0
      %642 = vmatprep.mubr.f32.mxu0 0.0
      %643 = vmatmul.mubr.f32.gmra.mrb[0].mxu0 %v438
      %v644 = vpop.f32.mrb[0].mxu0
      %v645 = vadd.f32 0.0, %v644
      %v646 = vpop.f32.mrb[0].mxu0
      %647 = vdwg.mxu0
      %v648 = vld [vmem:[%s302] sm:$0xff]
      %v649 = vld [vmem:[%s302 + $0x8] sm:$0xff]
      %v650 = vld [vmem:[%s302 + $0x10] sm:$0xff]
      %v651 = vld [vmem:[%s302 + $0x18] sm:$0xff]
      %v652 = vld [vmem:[%s302 + $0x20] sm:$0xff]
      %v653 = vld [vmem:[%s302 + $0x28] sm:$0xff]
      %v654 = vld [vmem:[%s302 + $0x30] sm:$0xff]
      %v655 = vld [vmem:[%s302 + $0x38] sm:$0xff]
      %v656 = vld [vmem:[%s306] sm:$0x1]
      %657 = vset.pattern.permute.xlu0 0
      %658 = vperm.xlu0 %657, %v648
      %v659 = vpop.permute.xlu0 %658
      %660 = vset.pattern.permute.xlu0 0
      %661 = vperm.xlu0 %660, %v649
      %v662 = vpop.permute.xlu0 %661
      %663 = vset.pattern.permute.xlu0 0
      %664 = vperm.xlu0 %663, %v650
      %v665 = vpop.permute.xlu0 %664
      %666 = vset.pattern.permute.xlu0 0
      %667 = vperm.xlu0 %666, %v651
      %v668 = vpop.permute.xlu0 %667
      %669 = vset.pattern.permute.xlu0 0
      %670 = vperm.xlu0 %669, %v652
      %v671 = vpop.permute.xlu0 %670
      %672 = vset.pattern.permute.xlu0 0
      %673 = vperm.xlu0 %672, %v653
      %v674 = vpop.permute.xlu0 %673
      %675 = vset.pattern.permute.xlu0 0
      %676 = vperm.xlu0 %675, %v654
      %v677 = vpop.permute.xlu0 %676
      %678 = vset.pattern.permute.xlu0 0
      %679 = vperm.xlu0 %678, %v655
      %v680 = vpop.permute.xlu0 %679
      %v681 = vlaneseq
      %v682 = vshrl.u32 %v681, 7
      %v683 = vsub.s32 0, %v682
      %v684 = vrot.slane %v656, %v683
      %vm685 = vcmp.eq.s32.totalorder %v659, %v684
      %vm686 = vcmp.eq.s32.totalorder %v662, %v684
      %vm687 = vcmp.eq.s32.totalorder %v665, %v684
      %vm688 = vcmp.eq.s32.totalorder %v668, %v684
      %vm689 = vcmp.eq.s32.totalorder %v671, %v684
      %vm690 = vcmp.eq.s32.totalorder %v674, %v684
      %vm691 = vcmp.eq.s32.totalorder %v677, %v684
      %vm692 = vcmp.eq.s32.totalorder %v680, %v684
      %s693 = smul.u32 %s22, 64
      %v694 = vlaneseq
      %v695 = vshrl.u32 %v694, 7
      %v696 = vadd.s32 %v695, 8
      %v697 = vadd.s32 %v695, 16
      %v698 = vadd.s32 %v695, 24
      %v699 = vadd.s32 %v695, 32
      %v700 = vadd.s32 %v695, 40
      %v701 = vadd.s32 %v695, 48
      %v702 = vadd.s32 %v695, 56
      %v703 = vstv %s693
      %v704 = vadd.s32 %v703, %v695
      %v705 = vadd.s32 %v703, %v696
      %v706 = vadd.s32 %v703, %v697
      %v707 = vadd.s32 %v703, %v698
      %v708 = vadd.s32 %v703, %v699
      %v709 = vadd.s32 %v703, %v700
      %v710 = vadd.s32 %v703, %v701
      %v711 = vadd.s32 %v703, %v702
      %s712 = smul.u32 %s24, 64
      %v713 = vlaneseq
      %v714 = vand.u32 %v713, 127
      %v715 = vstv %s712
      %v716 = vadd.s32 %v715, %v714
      %vm717 = vcmp.ne.s32.totalorder %v704, %v716
      %vm718 = vcmp.ne.s32.totalorder %v705, %v716
      %vm719 = vcmp.ne.s32.totalorder %v706, %v716
      %vm720 = vcmp.ne.s32.totalorder %v707, %v716
      %vm721 = vcmp.ne.s32.totalorder %v708, %v716
      %vm722 = vcmp.ne.s32.totalorder %v709, %v716
      %vm723 = vcmp.ne.s32.totalorder %v710, %v716
      %vm724 = vcmp.ne.s32.totalorder %v711, %v716
      %vm725 = vmand %vm685, %vm717
      %vm726 = vmand %vm686, %vm718
      %vm727 = vmand %vm687, %vm719
      %vm728 = vmand %vm688, %vm720
      %vm729 = vmand %vm689, %vm721
      %vm730 = vmand %vm690, %vm722
      %vm731 = vmand %vm691, %vm723
      %vm732 = vmand %vm692, %vm724
      %vm733 = vmxor %vm685, 1
      %vm734 = vmxor %vm686, 1
      %vm735 = vmxor %vm687, 1
      %vm736 = vmxor %vm688, 1
      %vm737 = vmxor %vm689, 1
      %vm738 = vmxor %vm690, 1
      %vm739 = vmxor %vm691, 1
      %vm740 = vmxor %vm692, 1
      %p741 = scmp.eq.s32.totalorder %s23, 0
      // Predicated region
      $region37: #{multi_similarity_loss.1} parent=35 // pred_check
        %p742 = pneg %p741
      $region38: #{multi_similarity_loss.1} parent=35 // pred_check_branch
        %744 = sbr.rel (%p742) target = $region40
      $region39: #{multi_similarity_loss.1} parent=35 // pred_region
        %p745 = scmp.eq.s32.totalorder %s24, 0
        // Predicated region
        $region41: #{multi_similarity_loss.1} parent=39 // pred_check
          %p746 = pneg %p745
        $region42: #{multi_similarity_loss.1} parent=39 // pred_check_branch
          %748 = sbr.rel (%p746) target = $region44
        $region43: #{multi_similarity_loss.1} parent=39 // pred_region
          %vm749 = vcmask 7168
          %750 = vst.msk [vmem:[#allocation2] sm:$0xff] %vm749, -inf
          %751 = vst.msk [vmem:[#allocation2 + $0x8] sm:$0xff] %vm749, -inf
          %752 = vst.msk [vmem:[#allocation2 + $0x10] sm:$0xff] %vm749, -inf
          %753 = vst.msk [vmem:[#allocation2 + $0x18] sm:$0xff] %vm749, -inf
          %754 = vst.msk [vmem:[#allocation2 + $0x20] sm:$0xff] %vm749, -inf
          %755 = vst.msk [vmem:[#allocation2 + $0x28] sm:$0xff] %vm749, -inf
          %756 = vst.msk [vmem:[#allocation2 + $0x30] sm:$0xff] %vm749, -inf
          %757 = vst.msk [vmem:[#allocation2 + $0x38] sm:$0xff] %vm749, -inf
          %758 = vst.msk [vmem:[#allocation3] sm:$0xff] %vm749, inf
          %759 = vst.msk [vmem:[#allocation3 + $0x8] sm:$0xff] %vm749, inf
          %760 = vst.msk [vmem:[#allocation3 + $0x10] sm:$0xff] %vm749, inf
          %761 = vst.msk [vmem:[#allocation3 + $0x18] sm:$0xff] %vm749, inf
          %762 = vst.msk [vmem:[#allocation3 + $0x20] sm:$0xff] %vm749, inf
          %763 = vst.msk [vmem:[#allocation3 + $0x28] sm:$0xff] %vm749, inf
          %764 = vst.msk [vmem:[#allocation3 + $0x30] sm:$0xff] %vm749, inf
          %765 = vst.msk [vmem:[#allocation3 + $0x38] sm:$0xff] %vm749, inf
        $region44: #{multi_similarity_loss.1} parent=39 // pred_fallthru
          _
        %v766 = vld [vmem:[#allocation2] sm:$0xff]
        %v767 = vld [vmem:[#allocation2 + $0x8] sm:$0xff]
        %v768 = vld [vmem:[#allocation2 + $0x10] sm:$0xff]
        %v769 = vld [vmem:[#allocation2 + $0x18] sm:$0xff]
        %v770 = vld [vmem:[#allocation2 + $0x20] sm:$0xff]
        %v771 = vld [vmem:[#allocation2 + $0x28] sm:$0xff]
        %v772 = vld [vmem:[#allocation2 + $0x30] sm:$0xff]
        %v773 = vld [vmem:[#allocation2 + $0x38] sm:$0xff]
        %v774 = vsel %vm733, %v610, -inf
        %v775 = vsel %vm734, %v615, -inf
        %v776 = vsel %vm735, %v620, -inf
        %v777 = vsel %vm736, %v625, -inf
        %v778 = vsel %vm737, %v630, -inf
        %v779 = vsel %vm738, %v635, -inf
        %v780 = vsel %vm739, %v640, -inf
        %v781 = vsel %vm740, %v645, -inf
        %vm782 = vcmask 523264
        %v783 = vsel %vm782, %v774, -inf
        %784 = vmax.xlane.f32.xlu0 %v783
        %v785 = vpop.xlane.xlu0 %784
        %v786 = vsel %vm782, %v775, -inf
        %787 = vmax.xlane.f32.xlu0 %v786
        %v788 = vpop.xlane.xlu0 %787
        %v789 = vsel %vm782, %v776, -inf
        %790 = vmax.xlane.f32.xlu0 %v789
        %v791 = vpop.xlane.xlu0 %790
        %v792 = vsel %vm782, %v777, -inf
        %793 = vmax.xlane.f32.xlu0 %v792
        %v794 = vpop.xlane.xlu0 %793
        %v795 = vsel %vm782, %v778, -inf
        %796 = vmax.xlane.f32.xlu0 %v795
        %v797 = vpop.xlane.xlu0 %796
        %v798 = vsel %vm782, %v779, -inf
        %799 = vmax.xlane.f32.xlu0 %v798
        %v800 = vpop.xlane.xlu0 %799
        %v801 = vsel %vm782, %v780, -inf
        %802 = vmax.xlane.f32.xlu0 %v801
        %v803 = vpop.xlane.xlu0 %802
        %v804 = vsel %vm782, %v781, -inf
        %805 = vmax.xlane.f32.xlu0 %v804
        %v806 = vpop.xlane.xlu0 %805
        %v807 = vmax.f32 %v766, %v785
        %v808 = vmax.f32 %v767, %v788
        %v809 = vmax.f32 %v768, %v791
        %v810 = vmax.f32 %v769, %v794
        %v811 = vmax.f32 %v770, %v797
        %v812 = vmax.f32 %v771, %v800
        %v813 = vmax.f32 %v772, %v803
        %v814 = vmax.f32 %v773, %v806
        %vm815 = vcmask 7168
        %816 = vst.msk [vmem:[#allocation2] sm:$0xff] %vm815, %v807
        %817 = vst.msk [vmem:[#allocation2 + $0x8] sm:$0xff] %vm815, %v808
        %818 = vst.msk [vmem:[#allocation2 + $0x10] sm:$0xff] %vm815, %v809
        %819 = vst.msk [vmem:[#allocation2 + $0x18] sm:$0xff] %vm815, %v810
        %820 = vst.msk [vmem:[#allocation2 + $0x20] sm:$0xff] %vm815, %v811
        %821 = vst.msk [vmem:[#allocation2 + $0x28] sm:$0xff] %vm815, %v812
        %822 = vst.msk [vmem:[#allocation2 + $0x30] sm:$0xff] %vm815, %v813
        %823 = vst.msk [vmem:[#allocation2 + $0x38] sm:$0xff] %vm815, %v814
        %v824 = vld [vmem:[#allocation3] sm:$0xff]
        %v825 = vld [vmem:[#allocation3 + $0x8] sm:$0xff]
        %v826 = vld [vmem:[#allocation3 + $0x10] sm:$0xff]
        %v827 = vld [vmem:[#allocation3 + $0x18] sm:$0xff]
        %v828 = vld [vmem:[#allocation3 + $0x20] sm:$0xff]
        %v829 = vld [vmem:[#allocation3 + $0x28] sm:$0xff]
        %v830 = vld [vmem:[#allocation3 + $0x30] sm:$0xff]
        %v831 = vld [vmem:[#allocation3 + $0x38] sm:$0xff]
        %v832 = vsel %vm725, %v610, inf
        %v833 = vsel %vm726, %v615, inf
        %v834 = vsel %vm727, %v620, inf
        %v835 = vsel %vm728, %v625, inf
        %v836 = vsel %vm729, %v630, inf
        %v837 = vsel %vm730, %v635, inf
        %v838 = vsel %vm731, %v640, inf
        %v839 = vsel %vm732, %v645, inf
        %v840 = vsel %vm782, %v832, inf
        %841 = vmin.xlane.f32.xlu0 %v840
        %v842 = vpop.xlane.xlu0 %841
        %v843 = vsel %vm782, %v833, inf
        %844 = vmin.xlane.f32.xlu0 %v843
        %v845 = vpop.xlane.xlu0 %844
        %v846 = vsel %vm782, %v834, inf
        %847 = vmin.xlane.f32.xlu0 %v846
        %v848 = vpop.xlane.xlu0 %847
        %v849 = vsel %vm782, %v835, inf
        %850 = vmin.xlane.f32.xlu0 %v849
        %v851 = vpop.xlane.xlu0 %850
        %v852 = vsel %vm782, %v836, inf
        %853 = vmin.xlane.f32.xlu0 %v852
        %v854 = vpop.xlane.xlu0 %853
        %v855 = vsel %vm782, %v837, inf
        %856 = vmin.xlane.f32.xlu0 %v855
        %v857 = vpop.xlane.xlu0 %856
        %v858 = vsel %vm782, %v838, inf
        %859 = vmin.xlane.f32.xlu0 %v858
        %v860 = vpop.xlane.xlu0 %859
        %v861 = vsel %vm782, %v839, inf
        %862 = vmin.xlane.f32.xlu0 %v861
        %v863 = vpop.xlane.xlu0 %862
        %v864 = vmin.f32 %v824, %v842
        %v865 = vmin.f32 %v825, %v845
        %v866 = vmin.f32 %v826, %v848
        %v867 = vmin.f32 %v827, %v851
        %v868 = vmin.f32 %v828, %v854
        %v869 = vmin.f32 %v829, %v857
        %v870 = vmin.f32 %v830, %v860
        %v871 = vmin.f32 %v831, %v863
        %872 = vst.msk [vmem:[#allocation3] sm:$0xff] %vm815, %v864
        %873 = vst.msk [vmem:[#allocation3 + $0x8] sm:$0xff] %vm815, %v865
        %874 = vst.msk [vmem:[#allocation3 + $0x10] sm:$0xff] %vm815, %v866
        %875 = vst.msk [vmem:[#allocation3 + $0x18] sm:$0xff] %vm815, %v867
        %876 = vst.msk [vmem:[#allocation3 + $0x20] sm:$0xff] %vm815, %v868
        %877 = vst.msk [vmem:[#allocation3 + $0x28] sm:$0xff] %vm815, %v869
        %878 = vst.msk [vmem:[#allocation3 + $0x30] sm:$0xff] %vm815, %v870
        %879 = vst.msk [vmem:[#allocation3 + $0x38] sm:$0xff] %vm815, %v871
      $region40: #{multi_similarity_loss.1} parent=35 // pred_fallthru
        _
      %p880 = scmp.eq.s32.totalorder %s23, 1
      // Predicated region
      $region45: #{multi_similarity_loss.1} parent=35 // pred_check
        %p881 = pneg %p880
      $region46: #{multi_similarity_loss.1} parent=35 // pred_check_branch
        %883 = sbr.rel (%p881) target = $region48
      $region47: #{multi_similarity_loss.1} parent=35 // pred_region
        %p884 = scmp.eq.s32.totalorder %s24, 0
        // Predicated region
        $region49: #{multi_similarity_loss.1} parent=47 // pred_check
          %p885 = pneg %p884
        $region50: #{multi_similarity_loss.1} parent=47 // pred_check_branch
          %887 = sbr.rel (%p885) target = $region52
        $region51: #{multi_similarity_loss.1} parent=47 // pred_region
          %vm888 = vcmask 7168
          %889 = vst.msk [vmem:[#allocation4] sm:$0xff] %vm888, 0.0
          %890 = vst.msk [vmem:[#allocation4 + $0x8] sm:$0xff] %vm888, 0.0
          %891 = vst.msk [vmem:[#allocation4 + $0x10] sm:$0xff] %vm888, 0.0
          %892 = vst.msk [vmem:[#allocation4 + $0x18] sm:$0xff] %vm888, 0.0
          %893 = vst.msk [vmem:[#allocation4 + $0x20] sm:$0xff] %vm888, 0.0
          %894 = vst.msk [vmem:[#allocation4 + $0x28] sm:$0xff] %vm888, 0.0
          %895 = vst.msk [vmem:[#allocation4 + $0x30] sm:$0xff] %vm888, 0.0
          %896 = vst.msk [vmem:[#allocation4 + $0x38] sm:$0xff] %vm888, 0.0
          %897 = vst.msk [vmem:[#allocation5] sm:$0xff] %vm888, 1.0
          %898 = vst.msk [vmem:[#allocation5 + $0x8] sm:$0xff] %vm888, 1.0
          %899 = vst.msk [vmem:[#allocation5 + $0x10] sm:$0xff] %vm888, 1.0
          %900 = vst.msk [vmem:[#allocation5 + $0x18] sm:$0xff] %vm888, 1.0
          %901 = vst.msk [vmem:[#allocation5 + $0x20] sm:$0xff] %vm888, 1.0
          %902 = vst.msk [vmem:[#allocation5 + $0x28] sm:$0xff] %vm888, 1.0
          %903 = vst.msk [vmem:[#allocation5 + $0x30] sm:$0xff] %vm888, 1.0
          %904 = vst.msk [vmem:[#allocation5 + $0x38] sm:$0xff] %vm888, 1.0
          %905 = vst.msk [vmem:[#allocation6] sm:$0xff] %vm888, 0.0
          %906 = vst.msk [vmem:[#allocation6 + $0x8] sm:$0xff] %vm888, 0.0
          %907 = vst.msk [vmem:[#allocation6 + $0x10] sm:$0xff] %vm888, 0.0
          %908 = vst.msk [vmem:[#allocation6 + $0x18] sm:$0xff] %vm888, 0.0
          %909 = vst.msk [vmem:[#allocation6 + $0x20] sm:$0xff] %vm888, 0.0
          %910 = vst.msk [vmem:[#allocation6 + $0x28] sm:$0xff] %vm888, 0.0
          %911 = vst.msk [vmem:[#allocation6 + $0x30] sm:$0xff] %vm888, 0.0
          %912 = vst.msk [vmem:[#allocation6 + $0x38] sm:$0xff] %vm888, 0.0
          %913 = vst.msk [vmem:[#allocation7] sm:$0xff] %vm888, 1.0
          %914 = vst.msk [vmem:[#allocation7 + $0x8] sm:$0xff] %vm888, 1.0
          %915 = vst.msk [vmem:[#allocation7 + $0x10] sm:$0xff] %vm888, 1.0
          %916 = vst.msk [vmem:[#allocation7 + $0x18] sm:$0xff] %vm888, 1.0
          %917 = vst.msk [vmem:[#allocation7 + $0x20] sm:$0xff] %vm888, 1.0
          %918 = vst.msk [vmem:[#allocation7 + $0x28] sm:$0xff] %vm888, 1.0
          %919 = vst.msk [vmem:[#allocation7 + $0x30] sm:$0xff] %vm888, 1.0
          %920 = vst.msk [vmem:[#allocation7 + $0x38] sm:$0xff] %vm888, 1.0
          %vm921 = vcmask 15360
          %922 = vst.msk [vmem:[%s317] sm:$0xff] %vm921, 0.0
          %923 = vst.msk [vmem:[%s317 + $0x8] sm:$0xff] %vm921, 0.0
          %924 = vst.msk [vmem:[%s317 + $0x10] sm:$0xff] %vm921, 0.0
          %925 = vst.msk [vmem:[%s317 + $0x18] sm:$0xff] %vm921, 0.0
          %926 = vst.msk [vmem:[%s317 + $0x20] sm:$0xff] %vm921, 0.0
          %927 = vst.msk [vmem:[%s317 + $0x28] sm:$0xff] %vm921, 0.0
          %928 = vst.msk [vmem:[%s317 + $0x30] sm:$0xff] %vm921, 0.0
          %929 = vst.msk [vmem:[%s317 + $0x38] sm:$0xff] %vm921, 0.0
        $region52: #{multi_similarity_loss.1} parent=47 // pred_fallthru
          _
        %v930 = vsub.f32 %v610, 0.1
        %v931 = vsub.f32 %v615, 0.1
        %v932 = vsub.f32 %v620, 0.1
        %v933 = vsub.f32 %v625, 0.1
        %v934 = vsub.f32 %v630, 0.1
        %v935 = vsub.f32 %v635, 0.1
        %v936 = vsub.f32 %v640, 0.1
        %v937 = vsub.f32 %v645, 0.1
        %v938 = vld [vmem:[#allocation2] sm:$0xff]
        %v939 = vld [vmem:[#allocation2 + $0x8] sm:$0xff]
        %v940 = vld [vmem:[#allocation2 + $0x10] sm:$0xff]
        %v941 = vld [vmem:[#allocation2 + $0x18] sm:$0xff]
        %v942 = vld [vmem:[#allocation2 + $0x20] sm:$0xff]
        %v943 = vld [vmem:[#allocation2 + $0x28] sm:$0xff]
        %v944 = vld [vmem:[#allocation2 + $0x30] sm:$0xff]
        %v945 = vld [vmem:[#allocation2 + $0x38] sm:$0xff]
        %947 = vset.pattern.permute.xlu0 0
        %948 = vperm.xlu0 %947, %v938
        %v949 = vpop.permute.xlu0 %948
        %952 = vset.pattern.permute.xlu0 0
        %953 = vperm.xlu0 %952, %v939
        %v954 = vpop.permute.xlu0 %953
        %957 = vset.pattern.permute.xlu0 0
        %958 = vperm.xlu0 %957, %v940
        %v959 = vpop.permute.xlu0 %958
        %962 = vset.pattern.permute.xlu0 0
        %963 = vperm.xlu0 %962, %v941
        %v964 = vpop.permute.xlu0 %963
        %967 = vset.pattern.permute.xlu0 0
        %968 = vperm.xlu0 %967, %v942
        %v969 = vpop.permute.xlu0 %968
        %972 = vset.pattern.permute.xlu0 0
        %973 = vperm.xlu0 %972, %v943
        %v974 = vpop.permute.xlu0 %973
        %977 = vset.pattern.permute.xlu0 0
        %978 = vperm.xlu0 %977, %v944
        %v979 = vpop.permute.xlu0 %978
        %982 = vset.pattern.permute.xlu0 0
        %983 = vperm.xlu0 %982, %v945
        %v984 = vpop.permute.xlu0 %983
        %vm986 = vcmp.lt.f32.partialorder %v930, %v949
        %vm987 = vcmp.lt.f32.partialorder %v931, %v954
        %vm988 = vcmp.lt.f32.partialorder %v932, %v959
        %vm989 = vcmp.lt.f32.partialorder %v933, %v964
        %vm990 = vcmp.lt.f32.partialorder %v934, %v969
        %vm991 = vcmp.lt.f32.partialorder %v935, %v974
        %vm992 = vcmp.lt.f32.partialorder %v936, %v979
        %vm993 = vcmp.lt.f32.partialorder %v937, %v984
        %vm994 = vmand %vm725, %vm986
        %vm995 = vmand %vm726, %vm987
        %vm996 = vmand %vm727, %vm988
        %vm997 = vmand %vm728, %vm989
        %vm998 = vmand %vm729, %vm990
        %vm999 = vmand %vm730, %vm991
        %vm1000 = vmand %vm731, %vm992
        %vm1001 = vmand %vm732, %vm993
        %v1002 = vadd.f32 %v610, 0.1
        %v1003 = vadd.f32 %v615, 0.1
        %v1004 = vadd.f32 %v620, 0.1
        %v1005 = vadd.f32 %v625, 0.1
        %v1006 = vadd.f32 %v630, 0.1
        %v1007 = vadd.f32 %v635, 0.1
        %v1008 = vadd.f32 %v640, 0.1
        %v1009 = vadd.f32 %v645, 0.1
        %v1010 = vld [vmem:[#allocation3] sm:$0xff]
        %v1011 = vld [vmem:[#allocation3 + $0x8] sm:$0xff]
        %v1012 = vld [vmem:[#allocation3 + $0x10] sm:$0xff]
        %v1013 = vld [vmem:[#allocation3 + $0x18] sm:$0xff]
        %v1014 = vld [vmem:[#allocation3 + $0x20] sm:$0xff]
        %v1015 = vld [vmem:[#allocation3 + $0x28] sm:$0xff]
        %v1016 = vld [vmem:[#allocation3 + $0x30] sm:$0xff]
        %v1017 = vld [vmem:[#allocation3 + $0x38] sm:$0xff]
        %1019 = vset.pattern.permute.xlu0 0
        %1020 = vperm.xlu0 %1019, %v1010
        %v1021 = vpop.permute.xlu0 %1020
        %1024 = vset.pattern.permute.xlu0 0
        %1025 = vperm.xlu0 %1024, %v1011
        %v1026 = vpop.permute.xlu0 %1025
        %1029 = vset.pattern.permute.xlu0 0
        %1030 = vperm.xlu0 %1029, %v1012
        %v1031 = vpop.permute.xlu0 %1030
        %1034 = vset.pattern.permute.xlu0 0
        %1035 = vperm.xlu0 %1034, %v1013
        %v1036 = vpop.permute.xlu0 %1035
        %1039 = vset.pattern.permute.xlu0 0
        %1040 = vperm.xlu0 %1039, %v1014
        %v1041 = vpop.permute.xlu0 %1040
        %1044 = vset.pattern.permute.xlu0 0
        %1045 = vperm.xlu0 %1044, %v1015
        %v1046 = vpop.permute.xlu0 %1045
        %1049 = vset.pattern.permute.xlu0 0
        %1050 = vperm.xlu0 %1049, %v1016
        %v1051 = vpop.permute.xlu0 %1050
        %1054 = vset.pattern.permute.xlu0 0
        %1055 = vperm.xlu0 %1054, %v1017
        %v1056 = vpop.permute.xlu0 %1055
        %vm1058 = vcmp.gt.f32.partialorder %v1002, %v1021
        %vm1059 = vcmp.gt.f32.partialorder %v1003, %v1026
        %vm1060 = vcmp.gt.f32.partialorder %v1004, %v1031
        %vm1061 = vcmp.gt.f32.partialorder %v1005, %v1036
        %vm1062 = vcmp.gt.f32.partialorder %v1006, %v1041
        %vm1063 = vcmp.gt.f32.partialorder %v1007, %v1046
        %vm1064 = vcmp.gt.f32.partialorder %v1008, %v1051
        %vm1065 = vcmp.gt.f32.partialorder %v1009, %v1056
        %vm1066 = vmand %vm733, %vm1058
        %vm1067 = vmand %vm734, %vm1059
        %vm1068 = vmand %vm735, %vm1060
        %vm1069 = vmand %vm736, %vm1061
        %vm1070 = vmand %vm737, %vm1062
        %vm1071 = vmand %vm738, %vm1063
        %vm1072 = vmand %vm739, %vm1064
        %vm1073 = vmand %vm740, %vm1065
        %v1074 = vsub.f32 0.5, %v610
        %v1075 = vsub.f32 0.5, %v615
        %v1076 = vsub.f32 0.5, %v620
        %v1077 = vsub.f32 0.5, %v625
        %v1078 = vsub.f32 0.5, %v630
        %v1079 = vsub.f32 0.5, %v635
        %v1080 = vsub.f32 0.5, %v640
        %v1081 = vsub.f32 0.5, %v645
        %v1082 = vmul.f32 %v1074, 2.0
        %v1083 = vmul.f32 %v1075, 2.0
        %v1084 = vmul.f32 %v1076, 2.0
        %v1085 = vmul.f32 %v1077, 2.0
        %v1086 = vmul.f32 %v1078, 2.0
        %v1087 = vmul.f32 %v1079, 2.0
        %v1088 = vmul.f32 %v1080, 2.0
        %v1089 = vmul.f32 %v1081, 2.0
        %v1090 = vsel %vm994, %v1082, -inf
        %v1091 = vsel %vm995, %v1083, -inf
        %v1092 = vsel %vm996, %v1084, -inf
        %v1093 = vsel %vm997, %v1085, -inf
        %v1094 = vsel %vm998, %v1086, -inf
        %v1095 = vsel %vm999, %v1087, -inf
        %v1096 = vsel %vm1000, %v1088, -inf
        %v1097 = vsel %vm1001, %v1089, -inf
        %v1098 = vsub.f32 %v610, 0.5
        %v1099 = vsub.f32 %v615, 0.5
        %v1100 = vsub.f32 %v620, 0.5
        %v1101 = vsub.f32 %v625, 0.5
        %v1102 = vsub.f32 %v630, 0.5
        %v1103 = vsub.f32 %v635, 0.5
        %v1104 = vsub.f32 %v640, 0.5
        %v1105 = vsub.f32 %v645, 0.5
        %v1106 = vmul.f32 %v1098, 50.0
        %v1107 = vmul.f32 %v1099, 50.0
        %v1108 = vmul.f32 %v1100, 50.0
        %v1109 = vmul.f32 %v1101, 50.0
        %v1110 = vmul.f32 %v1102, 50.0
        %v1111 = vmul.f32 %v1103, 50.0
        %v1112 = vmul.f32 %v1104, 50.0
        %v1113 = vmul.f32 %v1105, 50.0
        %v1114 = vsel %vm1066, %v1106, -inf
        %v1115 = vsel %vm1067, %v1107, -inf
        %v1116 = vsel %vm1068, %v1108, -inf
        %v1117 = vsel %vm1069, %v1109, -inf
        %v1118 = vsel %vm1070, %v1110, -inf
        %v1119 = vsel %vm1071, %v1111, -inf
        %v1120 = vsel %vm1072, %v1112, -inf
        %v1121 = vsel %vm1073, %v1113, -inf
        %v1122 = vld [vmem:[#allocation4] sm:$0xff]
        %v1123 = vld [vmem:[#allocation4 + $0x8] sm:$0xff]
        %v1124 = vld [vmem:[#allocation4 + $0x10] sm:$0xff]
        %v1125 = vld [vmem:[#allocation4 + $0x18] sm:$0xff]
        %v1126 = vld [vmem:[#allocation4 + $0x20] sm:$0xff]
        %v1127 = vld [vmem:[#allocation4 + $0x28] sm:$0xff]
        %v1128 = vld [vmem:[#allocation4 + $0x30] sm:$0xff]
        %v1129 = vld [vmem:[#allocation4 + $0x38] sm:$0xff]
        %vm1130 = vcmask 523264
        %v1131 = vsel %vm1130, %v1090, -inf
        %1132 = vmax.xlane.f32.xlu0 %v1131
        %v1133 = vpop.xlane.xlu0 %1132
        %v1134 = vsel %vm1130, %v1091, -inf
        %1135 = vmax.xlane.f32.xlu0 %v1134
        %v1136 = vpop.xlane.xlu0 %1135
        %v1137 = vsel %vm1130, %v1092, -inf
        %1138 = vmax.xlane.f32.xlu0 %v1137
        %v1139 = vpop.xlane.xlu0 %1138
        %v1140 = vsel %vm1130, %v1093, -inf
        %1141 = vmax.xlane.f32.xlu0 %v1140
        %v1142 = vpop.xlane.xlu0 %1141
        %v1143 = vsel %vm1130, %v1094, -inf
        %1144 = vmax.xlane.f32.xlu0 %v1143
        %v1145 = vpop.xlane.xlu0 %1144
        %v1146 = vsel %vm1130, %v1095, -inf
        %1147 = vmax.xlane.f32.xlu0 %v1146
        %v1148 = vpop.xlane.xlu0 %1147
        %v1149 = vsel %vm1130, %v1096, -inf
        %1150 = vmax.xlane.f32.xlu0 %v1149
        %v1151 = vpop.xlane.xlu0 %1150
        %v1152 = vsel %vm1130, %v1097, -inf
        %1153 = vmax.xlane.f32.xlu0 %v1152
        %v1154 = vpop.xlane.xlu0 %1153
        %v1155 = vmax.f32 %v1122, %v1133
        %v1156 = vmax.f32 %v1123, %v1136
        %v1157 = vmax.f32 %v1124, %v1139
        %v1158 = vmax.f32 %v1125, %v1142
        %v1159 = vmax.f32 %v1126, %v1145
        %v1160 = vmax.f32 %v1127, %v1148
        %v1161 = vmax.f32 %v1128, %v1151
        %v1162 = vmax.f32 %v1129, %v1154
        %v1163 = vld [vmem:[#allocation5] sm:$0xff]
        %v1164 = vld [vmem:[#allocation5 + $0x8] sm:$0xff]
        %v1165 = vld [vmem:[#allocation5 + $0x10] sm:$0xff]
        %v1166 = vld [vmem:[#allocation5 + $0x18] sm:$0xff]
        %v1167 = vld [vmem:[#allocation5 + $0x20] sm:$0xff]
        %v1168 = vld [vmem:[#allocation5 + $0x28] sm:$0xff]
        %v1169 = vld [vmem:[#allocation5 + $0x30] sm:$0xff]
        %v1170 = vld [vmem:[#allocation5 + $0x38] sm:$0xff]
        %v1171 = vsub.f32 %v1122, %v1155
        %v1172 = vsub.f32 %v1123, %v1156
        %v1173 = vsub.f32 %v1124, %v1157
        %v1174 = vsub.f32 %v1125, %v1158
        %v1175 = vsub.f32 %v1126, %v1159
        %v1176 = vsub.f32 %v1127, %v1160
        %v1177 = vsub.f32 %v1128, %v1161
        %v1178 = vsub.f32 %v1129, %v1162
        %v1179 = vmul.f32 %v1171, 1.442695
        %v1180 = vpow.pop %v1179
        %v1181 = vmul.f32 %v1172, 1.442695
        %v1182 = vpow.pop %v1181
        %v1183 = vmul.f32 %v1173, 1.442695
        %v1184 = vpow.pop %v1183
        %v1185 = vmul.f32 %v1174, 1.442695
        %v1186 = vpow.pop %v1185
        %v1187 = vmul.f32 %v1175, 1.442695
        %v1188 = vpow.pop %v1187
        %v1189 = vmul.f32 %v1176, 1.442695
        %v1190 = vpow.pop %v1189
        %v1191 = vmul.f32 %v1177, 1.442695
        %v1192 = vpow.pop %v1191
        %v1193 = vmul.f32 %v1178, 1.442695
        %v1194 = vpow.pop %v1193
        %v1195 = vmul.f32 %v1163, %v1180
        %v1196 = vmul.f32 %v1164, %v1182
        %v1197 = vmul.f32 %v1165, %v1184
        %v1198 = vmul.f32 %v1166, %v1186
        %v1199 = vmul.f32 %v1167, %v1188
        %v1200 = vmul.f32 %v1168, %v1190
        %v1201 = vmul.f32 %v1169, %v1192
        %v1202 = vmul.f32 %v1170, %v1194
        %1204 = vset.pattern.permute.xlu0 0
        %1205 = vperm.xlu0 %1204, %v1155
        %v1206 = vpop.permute.xlu0 %1205
        %1209 = vset.pattern.permute.xlu0 0
        %1210 = vperm.xlu0 %1209, %v1156
        %v1211 = vpop.permute.xlu0 %1210
        %1214 = vset.pattern.permute.xlu0 0
        %1215 = vperm.xlu0 %1214, %v1157
        %v1216 = vpop.permute.xlu0 %1215
        %1219 = vset.pattern.permute.xlu0 0
        %1220 = vperm.xlu0 %1219, %v1158
        %v1221 = vpop.permute.xlu0 %1220
        %1224 = vset.pattern.permute.xlu0 0
        %1225 = vperm.xlu0 %1224, %v1159
        %v1226 = vpop.permute.xlu0 %1225
        %1229 = vset.pattern.permute.xlu0 0
        %1230 = vperm.xlu0 %1229, %v1160
        %v1231 = vpop.permute.xlu0 %1230
        %1234 = vset.pattern.permute.xlu0 0
        %1235 = vperm.xlu0 %1234, %v1161
        %v1236 = vpop.permute.xlu0 %1235
        %1239 = vset.pattern.permute.xlu0 0
        %1240 = vperm.xlu0 %1239, %v1162
        %v1241 = vpop.permute.xlu0 %1240
        %v1243 = vsub.f32 %v1090, %v1206
        %v1244 = vsub.f32 %v1091, %v1211
        %v1245 = vsub.f32 %v1092, %v1216
        %v1246 = vsub.f32 %v1093, %v1221
        %v1247 = vsub.f32 %v1094, %v1226
        %v1248 = vsub.f32 %v1095, %v1231
        %v1249 = vsub.f32 %v1096, %v1236
        %v1250 = vsub.f32 %v1097, %v1241
        %v1251 = vmul.f32 %v1243, 1.442695
        %v1252 = vpow.pop %v1251
        %v1253 = vmul.f32 %v1244, 1.442695
        %v1254 = vpow.pop %v1253
        %v1255 = vmul.f32 %v1245, 1.442695
        %v1256 = vpow.pop %v1255
        %v1257 = vmul.f32 %v1246, 1.442695
        %v1258 = vpow.pop %v1257
        %v1259 = vmul.f32 %v1247, 1.442695
        %v1260 = vpow.pop %v1259
        %v1261 = vmul.f32 %v1248, 1.442695
        %v1262 = vpow.pop %v1261
        %v1263 = vmul.f32 %v1249, 1.442695
        %v1264 = vpow.pop %v1263
        %v1265 = vmul.f32 %v1250, 1.442695
        %v1266 = vpow.pop %v1265
        %v1268 = vsel %vm1130, %v1252, 0
        %v1271 = vsel %vm1130, %v1254, 0
        %v1274 = vsel %vm1130, %v1256, 0
        %v1277 = vsel %vm1130, %v1258, 0
        %v1280 = vsel %vm1130, %v1260, 0
        %v1283 = vsel %vm1130, %v1262, 0
        %v1286 = vsel %vm1130, %v1264, 0
        %v1289 = vsel %vm1130, %v1266, 0
        %1291 = vmatprep.subr.mxu0 0.0
        %1292 = vmatpush1.msra.mxu0 1.0
        %1293 = vmatprep.subr.mxu0 0.0
        %1294 = vmatpush1.msra.mxu0 1.0
        %1295 = vmatprep.subr.mxu0 0.0
        %1296 = vmatpush1.msra.mxu0 1.0
        %1297 = vmatprep.subr.mxu0 0.0
        %1298 = vmatpush1.msra.mxu0 1.0
        %1299 = vmatprep.subr.mxu0 0.0
        %1300 = vmatpush1.msra.mxu0 1.0
        %1301 = vmatprep.subr.mxu0 0.0
        %1302 = vmatpush1.msra.mxu0 1.0
        %1303 = vmatprep.subr.mxu0 0.0
        %1304 = vmatpush1.msra.mxu0 1.0
        %1305 = vmatprep.subr.mxu0 0.0
        %1306 = vmatpush1.msra.mxu0 1.0
        %1307 = vmatprep.subr.mxu0 0.0
        %1308 = vmatpush1.msra.mxu0 0.0
        %1309 = vmatprep.subr.mxu0 0.0
        %1310 = vmatpush1.msra.mxu0 0.0
        %1311 = vmatprep.subr.mxu0 0.0
        %1312 = vmatpush1.msra.mxu0 0.0
        %1313 = vmatprep.subr.mxu0 0.0
        %1314 = vmatpush1.msra.mxu0 0.0
        %1315 = vmatprep.subr.mxu0 0.0
        %1316 = vmatpush1.msra.mxu0 0.0
        %1317 = vmatprep.subr.mxu0 0.0
        %1318 = vmatpush1.msra.mxu0 0.0
        %1319 = vmatprep.subr.mxu0 0.0
        %1320 = vmatpush1.msra.mxu0 0.0
        %1321 = vmatprep.subr.mxu0 0.0
        %1322 = vmatpush1.msra.mxu0 0.0
        %1323 = vmatprep.subr.mxu0 0.0
        %1324 = vmatpush1.msra.mxu0 0.0
        %1325 = vmatprep.subr.mxu0 0.0
        %1326 = vmatpush1.msra.mxu0 0.0
        %1327 = vmatprep.subr.mxu0 0.0
        %1328 = vmatpush1.msra.mxu0 0.0
        %1329 = vmatprep.subr.mxu0 0.0
        %1330 = vmatpush1.msra.mxu0 0.0
        %1331 = vmatprep.subr.mxu0 0.0
        %1332 = vmatpush1.msra.mxu0 0.0
        %1333 = vmatprep.subr.mxu0 0.0
        %1334 = vmatpush1.msra.mxu0 0.0
        %1335 = vmatprep.subr.mxu0 0.0
        %1336 = vmatpush1.msra.mxu0 0.0
        %1337 = vmatprep.subr.mxu0 0.0
        %1338 = vmatpush1.msra.mxu0 0.0
        %1339 = vmatprep.subr.mxu0 0.0
        %1340 = vmatpush1.msra.mxu0 0.0
        %1341 = vmatprep.subr.mxu0 0.0
        %1342 = vmatpush1.msra.mxu0 0.0
        %1343 = vmatprep.subr.mxu0 0.0
        %1344 = vmatpush1.msra.mxu0 0.0
        %1345 = vmatprep.subr.mxu0 0.0
        %1346 = vmatpush1.msra.mxu0 0.0
        %1347 = vmatprep.subr.mxu0 0.0
        %1348 = vmatpush1.msra.mxu0 0.0
        %1349 = vmatprep.subr.mxu0 0.0
        %1350 = vmatpush1.msra.mxu0 0.0
        %1351 = vmatprep.subr.mxu0 0.0
        %1352 = vmatpush1.msra.mxu0 0.0
        %1353 = vmatprep.subr.mxu0 0.0
        %1354 = vmatpush1.msra.mxu0 0.0
        %1355 = vmatprep.mubr.f32.mxu0 0.0
        %1356 = vmatmul.mubr.f32.gmra.mrb[0].mxu0 %v1268
        %v1357 = vpop.f32.mrb[0].mxu0
        %v1358 = vadd.f32 0.0, %v1357
        %v1359 = vpop.f32.mrb[0].mxu0
        %1360 = vmatprep.mubr.f32.mxu0 0.0
        %1361 = vmatmul.mubr.f32.gmra.mrb[0].mxu0 %v1271
        %v1362 = vpop.f32.mrb[0].mxu0
        %v1363 = vadd.f32 0.0, %v1362
        %v1364 = vpop.f32.mrb[0].mxu0
        %1365 = vmatprep.mubr.f32.mxu0 0.0
        %1366 = vmatmul.mubr.f32.gmra.mrb[0].mxu0 %v1274
        %v1367 = vpop.f32.mrb[0].mxu0
        %v1368 = vadd.f32 0.0, %v1367
        %v1369 = vpop.f32.mrb[0].mxu0
        %1370 = vmatprep.mubr.f32.mxu0 0.0
        %1371 = vmatmul.mubr.f32.gmra.mrb[0].mxu0 %v1277
        %v1372 = vpop.f32.mrb[0].mxu0
        %v1373 = vadd.f32 0.0, %v1372
        %v1374 = vpop.f32.mrb[0].mxu0
        %1375 = vmatprep.mubr.f32.mxu0 0.0
        %1376 = vmatmul.mubr.f32.gmra.mrb[0].mxu0 %v1280
        %v1377 = vpop.f32.mrb[0].mxu0
        %v1378 = vadd.f32 0.0, %v1377
        %v1379 = vpop.f32.mrb[0].mxu0
        %1380 = vmatprep.mubr.f32.mxu0 0.0
        %1381 = vmatmul.mubr.f32.gmra.mrb[0].mxu0 %v1283
        %v1382 = vpop.f32.mrb[0].mxu0
        %v1383 = vadd.f32 0.0, %v1382
        %v1384 = vpop.f32.mrb[0].mxu0
        %1385 = vmatprep.mubr.f32.mxu0 0.0
        %1386 = vmatmul.mubr.f32.gmra.mrb[0].mxu0 %v1286
        %v1387 = vpop.f32.mrb[0].mxu0
        %v1388 = vadd.f32 0.0, %v1387
        %v1389 = vpop.f32.mrb[0].mxu0
        %1390 = vmatprep.mubr.f32.mxu0 0.0
        %1391 = vmatmul.mubr.f32.gmra.mrb[0].mxu0 %v1289
        %v1392 = vpop.f32.mrb[0].mxu0
        %v1393 = vadd.f32 0.0, %v1392
        %v1394 = vpop.f32.mrb[0].mxu0
        %1395 = vdwg.mxu0
        %v1396 = vadd.f32 %v1195, %v1358
        %v1397 = vadd.f32 %v1196, %v1363
        %v1398 = vadd.f32 %v1197, %v1368
        %v1399 = vadd.f32 %v1198, %v1373
        %v1400 = vadd.f32 %v1199, %v1378
        %v1401 = vadd.f32 %v1200, %v1383
        %v1402 = vadd.f32 %v1201, %v1388
        %v1403 = vadd.f32 %v1202, %v1393
        %vm1404 = vcmask 7168
        %1405 = vst.msk [vmem:[#allocation5] sm:$0xff] %vm1404, %v1396
        %1406 = vst.msk [vmem:[#allocation5 + $0x8] sm:$0xff] %vm1404, %v1397
        %1407 = vst.msk [vmem:[#allocation5 + $0x10] sm:$0xff] %vm1404, %v1398
        %1408 = vst.msk [vmem:[#allocation5 + $0x18] sm:$0xff] %vm1404, %v1399
        %1409 = vst.msk [vmem:[#allocation5 + $0x20] sm:$0xff] %vm1404, %v1400
        %1410 = vst.msk [vmem:[#allocation5 + $0x28] sm:$0xff] %vm1404, %v1401
        %1411 = vst.msk [vmem:[#allocation5 + $0x30] sm:$0xff] %vm1404, %v1402
        %1412 = vst.msk [vmem:[#allocation5 + $0x38] sm:$0xff] %vm1404, %v1403
        %1413 = vst.msk [vmem:[#allocation4] sm:$0xff] %vm1404, %v1155
        %1414 = vst.msk [vmem:[#allocation4 + $0x8] sm:$0xff] %vm1404, %v1156
        %1415 = vst.msk [vmem:[#allocation4 + $0x10] sm:$0xff] %vm1404, %v1157
        %1416 = vst.msk [vmem:[#allocation4 + $0x18] sm:$0xff] %vm1404, %v1158
        %1417 = vst.msk [vmem:[#allocation4 + $0x20] sm:$0xff] %vm1404, %v1159
        %1418 = vst.msk [vmem:[#allocation4 + $0x28] sm:$0xff] %vm1404, %v1160
        %1419 = vst.msk [vmem:[#allocation4 + $0x30] sm:$0xff] %vm1404, %v1161
        %1420 = vst.msk [vmem:[#allocation4 + $0x38] sm:$0xff] %vm1404, %v1162
        %v1421 = vld [vmem:[#allocation6] sm:$0xff]
        %v1422 = vld [vmem:[#allocation6 + $0x8] sm:$0xff]
        %v1423 = vld [vmem:[#allocation6 + $0x10] sm:$0xff]
        %v1424 = vld [vmem:[#allocation6 + $0x18] sm:$0xff]
        %v1425 = vld [vmem:[#allocation6 + $0x20] sm:$0xff]
        %v1426 = vld [vmem:[#allocation6 + $0x28] sm:$0xff]
        %v1427 = vld [vmem:[#allocation6 + $0x30] sm:$0xff]
        %v1428 = vld [vmem:[#allocation6 + $0x38] sm:$0xff]
        %v1429 = vsel %vm1130, %v1114, -inf
        %1430 = vmax.xlane.f32.xlu0 %v1429
        %v1431 = vpop.xlane.xlu0 %1430
        %v1432 = vsel %vm1130, %v1115, -inf
        %1433 = vmax.xlane.f32.xlu0 %v1432
        %v1434 = vpop.xlane.xlu0 %1433
        %v1435 = vsel %vm1130, %v1116, -inf
        %1436 = vmax.xlane.f32.xlu0 %v1435
        %v1437 = vpop.xlane.xlu0 %1436
        %v1438 = vsel %vm1130, %v1117, -inf
        %1439 = vmax.xlane.f32.xlu0 %v1438
        %v1440 = vpop.xlane.xlu0 %1439
        %v1441 = vsel %vm1130, %v1118, -inf
        %1442 = vmax.xlane.f32.xlu0 %v1441
        %v1443 = vpop.xlane.xlu0 %1442
        %v1444 = vsel %vm1130, %v1119, -inf
        %1445 = vmax.xlane.f32.xlu0 %v1444
        %v1446 = vpop.xlane.xlu0 %1445
        %v1447 = vsel %vm1130, %v1120, -inf
        %1448 = vmax.xlane.f32.xlu0 %v1447
        %v1449 = vpop.xlane.xlu0 %1448
        %v1450 = vsel %vm1130, %v1121, -inf
        %1451 = vmax.xlane.f32.xlu0 %v1450
        %v1452 = vpop.xlane.xlu0 %1451
        %v1453 = vmax.f32 %v1421, %v1431
        %v1454 = vmax.f32 %v1422, %v1434
        %v1455 = vmax.f32 %v1423, %v1437
        %v1456 = vmax.f32 %v1424, %v1440
        %v1457 = vmax.f32 %v1425, %v1443
        %v1458 = vmax.f32 %v1426, %v1446
        %v1459 = vmax.f32 %v1427, %v1449
        %v1460 = vmax.f32 %v1428, %v1452
        %v1461 = vld [vmem:[#allocation7] sm:$0xff]
        %v1462 = vld [vmem:[#allocation7 + $0x8] sm:$0xff]
        %v1463 = vld [vmem:[#allocation7 + $0x10] sm:$0xff]
        %v1464 = vld [vmem:[#allocation7 + $0x18] sm:$0xff]
        %v1465 = vld [vmem:[#allocation7 + $0x20] sm:$0xff]
        %v1466 = vld [vmem:[#allocation7 + $0x28] sm:$0xff]
        %v1467 = vld [vmem:[#allocation7 + $0x30] sm:$0xff]
        %v1468 = vld [vmem:[#allocation7 + $0x38] sm:$0xff]
        %v1469 = vsub.f32 %v1421, %v1453
        %v1470 = vsub.f32 %v1422, %v1454
        %v1471 = vsub.f32 %v1423, %v1455
        %v1472 = vsub.f32 %v1424, %v1456
        %v1473 = vsub.f32 %v1425, %v1457
        %v1474 = vsub.f32 %v1426, %v1458
        %v1475 = vsub.f32 %v1427, %v1459
        %v1476 = vsub.f32 %v1428, %v1460
        %v1477 = vmul.f32 %v1469, 1.442695
        %v1478 = vpow.pop %v1477
        %v1479 = vmul.f32 %v1470, 1.442695
        %v1480 = vpow.pop %v1479
        %v1481 = vmul.f32 %v1471, 1.442695
        %v1482 = vpow.pop %v1481
        %v1483 = vmul.f32 %v1472, 1.442695
        %v1484 = vpow.pop %v1483
        %v1485 = vmul.f32 %v1473, 1.442695
        %v1486 = vpow.pop %v1485
        %v1487 = vmul.f32 %v1474, 1.442695
        %v1488 = vpow.pop %v1487
        %v1489 = vmul.f32 %v1475, 1.442695
        %v1490 = vpow.pop %v1489
        %v1491 = vmul.f32 %v1476, 1.442695
        %v1492 = vpow.pop %v1491
        %v1493 = vmul.f32 %v1461, %v1478
        %v1494 = vmul.f32 %v1462, %v1480
        %v1495 = vmul.f32 %v1463, %v1482
        %v1496 = vmul.f32 %v1464, %v1484
        %v1497 = vmul.f32 %v1465, %v1486
        %v1498 = vmul.f32 %v1466, %v1488
        %v1499 = vmul.f32 %v1467, %v1490
        %v1500 = vmul.f32 %v1468, %v1492
        %1502 = vset.pattern.permute.xlu0 0
        %1503 = vperm.xlu0 %1502, %v1453
        %v1504 = vpop.permute.xlu0 %1503
        %1507 = vset.pattern.permute.xlu0 0
        %1508 = vperm.xlu0 %1507, %v1454
        %v1509 = vpop.permute.xlu0 %1508
        %1512 = vset.pattern.permute.xlu0 0
        %1513 = vperm.xlu0 %1512, %v1455
        %v1514 = vpop.permute.xlu0 %1513
        %1517 = vset.pattern.permute.xlu0 0
        %1518 = vperm.xlu0 %1517, %v1456
        %v1519 = vpop.permute.xlu0 %1518
        %1522 = vset.pattern.permute.xlu0 0
        %1523 = vperm.xlu0 %1522, %v1457
        %v1524 = vpop.permute.xlu0 %1523
        %1527 = vset.pattern.permute.xlu0 0
        %1528 = vperm.xlu0 %1527, %v1458
        %v1529 = vpop.permute.xlu0 %1528
        %1532 = vset.pattern.permute.xlu0 0
        %1533 = vperm.xlu0 %1532, %v1459
        %v1534 = vpop.permute.xlu0 %1533
        %1537 = vset.pattern.permute.xlu0 0
        %1538 = vperm.xlu0 %1537, %v1460
        %v1539 = vpop.permute.xlu0 %1538
        %v1541 = vsub.f32 %v1114, %v1504
        %v1542 = vsub.f32 %v1115, %v1509
        %v1543 = vsub.f32 %v1116, %v1514
        %v1544 = vsub.f32 %v1117, %v1519
        %v1545 = vsub.f32 %v1118, %v1524
        %v1546 = vsub.f32 %v1119, %v1529
        %v1547 = vsub.f32 %v1120, %v1534
        %v1548 = vsub.f32 %v1121, %v1539
        %v1549 = vmul.f32 %v1541, 1.442695
        %v1550 = vpow.pop %v1549
        %v1551 = vmul.f32 %v1542, 1.442695
        %v1552 = vpow.pop %v1551
        %v1553 = vmul.f32 %v1543, 1.442695
        %v1554 = vpow.pop %v1553
        %v1555 = vmul.f32 %v1544, 1.442695
        %v1556 = vpow.pop %v1555
        %v1557 = vmul.f32 %v1545, 1.442695
        %v1558 = vpow.pop %v1557
        %v1559 = vmul.f32 %v1546, 1.442695
        %v1560 = vpow.pop %v1559
        %v1561 = vmul.f32 %v1547, 1.442695
        %v1562 = vpow.pop %v1561
        %v1563 = vmul.f32 %v1548, 1.442695
        %v1564 = vpow.pop %v1563
        %v1566 = vsel %vm1130, %v1550, 0
        %v1569 = vsel %vm1130, %v1552, 0
        %v1572 = vsel %vm1130, %v1554, 0
        %v1575 = vsel %vm1130, %v1556, 0
        %v1578 = vsel %vm1130, %v1558, 0
        %v1581 = vsel %vm1130, %v1560, 0
        %v1584 = vsel %vm1130, %v1562, 0
        %v1587 = vsel %vm1130, %v1564, 0
        %1589 = vmatprep.subr.mxu0 0.0
        %1590 = vmatpush1.msra.mxu0 1.0
        %1591 = vmatprep.subr.mxu0 0.0
        %1592 = vmatpush1.msra.mxu0 1.0
        %1593 = vmatprep.subr.mxu0 0.0
        %1594 = vmatpush1.msra.mxu0 1.0
        %1595 = vmatprep.subr.mxu0 0.0
        %1596 = vmatpush1.msra.mxu0 1.0
        %1597 = vmatprep.subr.mxu0 0.0
        %1598 = vmatpush1.msra.mxu0 1.0
        %1599 = vmatprep.subr.mxu0 0.0
        %1600 = vmatpush1.msra.mxu0 1.0
        %1601 = vmatprep.subr.mxu0 0.0
        %1602 = vmatpush1.msra.mxu0 1.0
        %1603 = vmatprep.subr.mxu0 0.0
        %1604 = vmatpush1.msra.mxu0 1.0
        %1605 = vmatprep.subr.mxu0 0.0
        %1606 = vmatpush1.msra.mxu0 0.0
        %1607 = vmatprep.subr.mxu0 0.0
        %1608 = vmatpush1.msra.mxu0 0.0
        %1609 = vmatprep.subr.mxu0 0.0
        %1610 = vmatpush1.msra.mxu0 0.0
        %1611 = vmatprep.subr.mxu0 0.0
        %1612 = vmatpush1.msra.mxu0 0.0
        %1613 = vmatprep.subr.mxu0 0.0
        %1614 = vmatpush1.msra.mxu0 0.0
        %1615 = vmatprep.subr.mxu0 0.0
        %1616 = vmatpush1.msra.mxu0 0.0
        %1617 = vmatprep.subr.mxu0 0.0
        %1618 = vmatpush1.msra.mxu0 0.0
        %1619 = vmatprep.subr.mxu0 0.0
        %1620 = vmatpush1.msra.mxu0 0.0
        %1621 = vmatprep.subr.mxu0 0.0
        %1622 = vmatpush1.msra.mxu0 0.0
        %1623 = vmatprep.subr.mxu0 0.0
        %1624 = vmatpush1.msra.mxu0 0.0
        %1625 = vmatprep.subr.mxu0 0.0
        %1626 = vmatpush1.msra.mxu0 0.0
        %1627 = vmatprep.subr.mxu0 0.0
        %1628 = vmatpush1.msra.mxu0 0.0
        %1629 = vmatprep.subr.mxu0 0.0
        %1630 = vmatpush1.msra.mxu0 0.0
        %1631 = vmatprep.subr.mxu0 0.0
        %1632 = vmatpush1.msra.mxu0 0.0
        %1633 = vmatprep.subr.mxu0 0.0
        %1634 = vmatpush1.msra.mxu0 0.0
        %1635 = vmatprep.subr.mxu0 0.0
        %1636 = vmatpush1.msra.mxu0 0.0
        %1637 = vmatprep.subr.mxu0 0.0
        %1638 = vmatpush1.msra.mxu0 0.0
        %1639 = vmatprep.subr.mxu0 0.0
        %1640 = vmatpush1.msra.mxu0 0.0
        %1641 = vmatprep.subr.mxu0 0.0
        %1642 = vmatpush1.msra.mxu0 0.0
        %1643 = vmatprep.subr.mxu0 0.0
        %1644 = vmatpush1.msra.mxu0 0.0
        %1645 = vmatprep.subr.mxu0 0.0
        %1646 = vmatpush1.msra.mxu0 0.0
        %1647 = vmatprep.subr.mxu0 0.0
        %1648 = vmatpush1.msra.mxu0 0.0
        %1649 = vmatprep.subr.mxu0 0.0
        %1650 = vmatpush1.msra.mxu0 0.0
        %1651 = vmatprep.subr.mxu0 0.0
        %1652 = vmatpush1.msra.mxu0 0.0
        %1653 = vmatprep.mubr.f32.mxu0 0.0
        %1654 = vmatmul.mubr.f32.gmra.mrb[0].mxu0 %v1566
        %v1655 = vpop.f32.mrb[0].mxu0
        %v1656 = vadd.f32 0.0, %v1655
        %v1657 = vpop.f32.mrb[0].mxu0
        %1658 = vmatprep.mubr.f32.mxu0 0.0
        %1659 = vmatmul.mubr.f32.gmra.mrb[0].mxu0 %v1569
        %v1660 = vpop.f32.mrb[0].mxu0
        %v1661 = vadd.f32 0.0, %v1660
        %v1662 = vpop.f32.mrb[0].mxu0
        %1663 = vmatprep.mubr.f32.mxu0 0.0
        %1664 = vmatmul.mubr.f32.gmra.mrb[0].mxu0 %v1572
        %v1665 = vpop.f32.mrb[0].mxu0
        %v1666 = vadd.f32 0.0, %v1665
        %v1667 = vpop.f32.mrb[0].mxu0
        %1668 = vmatprep.mubr.f32.mxu0 0.0
        %1669 = vmatmul.mubr.f32.gmra.mrb[0].mxu0 %v1575
        %v1670 = vpop.f32.mrb[0].mxu0
        %v1671 = vadd.f32 0.0, %v1670
        %v1672 = vpop.f32.mrb[0].mxu0
        %1673 = vmatprep.mubr.f32.mxu0 0.0
        %1674 = vmatmul.mubr.f32.gmra.mrb[0].mxu0 %v1578
        %v1675 = vpop.f32.mrb[0].mxu0
        %v1676 = vadd.f32 0.0, %v1675
        %v1677 = vpop.f32.mrb[0].mxu0
        %1678 = vmatprep.mubr.f32.mxu0 0.0
        %1679 = vmatmul.mubr.f32.gmra.mrb[0].mxu0 %v1581
        %v1680 = vpop.f32.mrb[0].mxu0
        %v1681 = vadd.f32 0.0, %v1680
        %v1682 = vpop.f32.mrb[0].mxu0
        %1683 = vmatprep.mubr.f32.mxu0 0.0
        %1684 = vmatmul.mubr.f32.gmra.mrb[0].mxu0 %v1584
        %v1685 = vpop.f32.mrb[0].mxu0
        %v1686 = vadd.f32 0.0, %v1685
        %v1687 = vpop.f32.mrb[0].mxu0
        %1688 = vmatprep.mubr.f32.mxu0 0.0
        %1689 = vmatmul.mubr.f32.gmra.mrb[0].mxu0 %v1587
        %v1690 = vpop.f32.mrb[0].mxu0
        %v1691 = vadd.f32 0.0, %v1690
        %v1692 = vpop.f32.mrb[0].mxu0
        %1693 = vdwg.mxu0
        %v1694 = vadd.f32 %v1493, %v1656
        %v1695 = vadd.f32 %v1494, %v1661
        %v1696 = vadd.f32 %v1495, %v1666
        %v1697 = vadd.f32 %v1496, %v1671
        %v1698 = vadd.f32 %v1497, %v1676
        %v1699 = vadd.f32 %v1498, %v1681
        %v1700 = vadd.f32 %v1499, %v1686
        %v1701 = vadd.f32 %v1500, %v1691
        %1702 = vst.msk [vmem:[#allocation7] sm:$0xff] %vm1404, %v1694
        %1703 = vst.msk [vmem:[#allocation7 + $0x8] sm:$0xff] %vm1404, %v1695
        %1704 = vst.msk [vmem:[#allocation7 + $0x10] sm:$0xff] %vm1404, %v1696
        %1705 = vst.msk [vmem:[#allocation7 + $0x18] sm:$0xff] %vm1404, %v1697
        %1706 = vst.msk [vmem:[#allocation7 + $0x20] sm:$0xff] %vm1404, %v1698
        %1707 = vst.msk [vmem:[#allocation7 + $0x28] sm:$0xff] %vm1404, %v1699
        %1708 = vst.msk [vmem:[#allocation7 + $0x30] sm:$0xff] %vm1404, %v1700
        %1709 = vst.msk [vmem:[#allocation7 + $0x38] sm:$0xff] %vm1404, %v1701
        %1710 = vst.msk [vmem:[#allocation6] sm:$0xff] %vm1404, %v1453
        %1711 = vst.msk [vmem:[#allocation6 + $0x8] sm:$0xff] %vm1404, %v1454
        %1712 = vst.msk [vmem:[#allocation6 + $0x10] sm:$0xff] %vm1404, %v1455
        %1713 = vst.msk [vmem:[#allocation6 + $0x18] sm:$0xff] %vm1404, %v1456
        %1714 = vst.msk [vmem:[#allocation6 + $0x20] sm:$0xff] %vm1404, %v1457
        %1715 = vst.msk [vmem:[#allocation6 + $0x28] sm:$0xff] %vm1404, %v1458
        %1716 = vst.msk [vmem:[#allocation6 + $0x30] sm:$0xff] %vm1404, %v1459
        %1717 = vst.msk [vmem:[#allocation6 + $0x38] sm:$0xff] %vm1404, %v1460
        %v1718 = vld [vmem:[%s317] sm:$0xff]
        %v1719 = vld [vmem:[%s317 + $0x8] sm:$0xff]
        %v1720 = vld [vmem:[%s317 + $0x10] sm:$0xff]
        %v1721 = vld [vmem:[%s317 + $0x18] sm:$0xff]
        %v1722 = vld [vmem:[%s317 + $0x20] sm:$0xff]
        %v1723 = vld [vmem:[%s317 + $0x28] sm:$0xff]
        %v1724 = vld [vmem:[%s317 + $0x30] sm:$0xff]
        %v1725 = vld [vmem:[%s317 + $0x38] sm:$0xff]
        %v1726 = vsel %vm994, 1.0, 0.0
        %v1727 = vsel %vm995, 1.0, 0.0
        %v1728 = vsel %vm996, 1.0, 0.0
        %v1729 = vsel %vm997, 1.0, 0.0
        %v1730 = vsel %vm998, 1.0, 0.0
        %v1731 = vsel %vm999, 1.0, 0.0
        %v1732 = vsel %vm1000, 1.0, 0.0
        %v1733 = vsel %vm1001, 1.0, 0.0
        %v1735 = vsel %vm1130, %v1726, 0
        %v1738 = vsel %vm1130, %v1727, 0
        %v1741 = vsel %vm1130, %v1728, 0
        %v1744 = vsel %vm1130, %v1729, 0
        %v1747 = vsel %vm1130, %v1730, 0
        %v1750 = vsel %vm1130, %v1731, 0
        %v1753 = vsel %vm1130, %v1732, 0
        %v1756 = vsel %vm1130, %v1733, 0
        %1758 = vmatprep.subr.mxu0 0.0
        %1759 = vmatpush1.msra.mxu0 1.0
        %1760 = vmatprep.subr.mxu0 0.0
        %1761 = vmatpush1.msra.mxu0 1.0
        %1762 = vmatprep.subr.mxu0 0.0
        %1763 = vmatpush1.msra.mxu0 1.0
        %1764 = vmatprep.subr.mxu0 0.0
        %1765 = vmatpush1.msra.mxu0 1.0
        %1766 = vmatprep.subr.mxu0 0.0
        %1767 = vmatpush1.msra.mxu0 1.0
        %1768 = vmatprep.subr.mxu0 0.0
        %1769 = vmatpush1.msra.mxu0 1.0
        %1770 = vmatprep.subr.mxu0 0.0
        %1771 = vmatpush1.msra.mxu0 1.0
        %1772 = vmatprep.subr.mxu0 0.0
        %1773 = vmatpush1.msra.mxu0 1.0
        %1774 = vmatprep.subr.mxu0 0.0
        %1775 = vmatpush1.msra.mxu0 0.0
        %1776 = vmatprep.subr.mxu0 0.0
        %1777 = vmatpush1.msra.mxu0 0.0
        %1778 = vmatprep.subr.mxu0 0.0
        %1779 = vmatpush1.msra.mxu0 0.0
        %1780 = vmatprep.subr.mxu0 0.0
        %1781 = vmatpush1.msra.mxu0 0.0
        %1782 = vmatprep.subr.mxu0 0.0
        %1783 = vmatpush1.msra.mxu0 0.0
        %1784 = vmatprep.subr.mxu0 0.0
        %1785 = vmatpush1.msra.mxu0 0.0
        %1786 = vmatprep.subr.mxu0 0.0
        %1787 = vmatpush1.msra.mxu0 0.0
        %1788 = vmatprep.subr.mxu0 0.0
        %1789 = vmatpush1.msra.mxu0 0.0
        %1790 = vmatprep.subr.mxu0 0.0
        %1791 = vmatpush1.msra.mxu0 0.0
        %1792 = vmatprep.subr.mxu0 0.0
        %1793 = vmatpush1.msra.mxu0 0.0
        %1794 = vmatprep.subr.mxu0 0.0
        %1795 = vmatpush1.msra.mxu0 0.0
        %1796 = vmatprep.subr.mxu0 0.0
        %1797 = vmatpush1.msra.mxu0 0.0
        %1798 = vmatprep.subr.mxu0 0.0
        %1799 = vmatpush1.msra.mxu0 0.0
        %1800 = vmatprep.subr.mxu0 0.0
        %1801 = vmatpush1.msra.mxu0 0.0
        %1802 = vmatprep.subr.mxu0 0.0
        %1803 = vmatpush1.msra.mxu0 0.0
        %1804 = vmatprep.subr.mxu0 0.0
        %1805 = vmatpush1.msra.mxu0 0.0
        %1806 = vmatprep.subr.mxu0 0.0
        %1807 = vmatpush1.msra.mxu0 0.0
        %1808 = vmatprep.subr.mxu0 0.0
        %1809 = vmatpush1.msra.mxu0 0.0
        %1810 = vmatprep.subr.mxu0 0.0
        %1811 = vmatpush1.msra.mxu0 0.0
        %1812 = vmatprep.subr.mxu0 0.0
        %1813 = vmatpush1.msra.mxu0 0.0
        %1814 = vmatprep.subr.mxu0 0.0
        %1815 = vmatpush1.msra.mxu0 0.0
        %1816 = vmatprep.subr.mxu0 0.0
        %1817 = vmatpush1.msra.mxu0 0.0
        %1818 = vmatprep.subr.mxu0 0.0
        %1819 = vmatpush1.msra.mxu0 0.0
        %1820 = vmatprep.subr.mxu0 0.0
        %1821 = vmatpush1.msra.mxu0 0.0
        %1822 = vmatprep.mubr.f32.mxu0 0.0
        %1823 = vmatmul.mubr.f32.gmra.mrb[0].mxu0 %v1735
        %v1824 = vpop.f32.mrb[0].mxu0
        %v1825 = vadd.f32 0.0, %v1824
        %v1826 = vpop.f32.mrb[0].mxu0
        %1827 = vmatprep.mubr.f32.mxu0 0.0
        %1828 = vmatmul.mubr.f32.gmra.mrb[0].mxu0 %v1738
        %v1829 = vpop.f32.mrb[0].mxu0
        %v1830 = vadd.f32 0.0, %v1829
        %v1831 = vpop.f32.mrb[0].mxu0
        %1832 = vmatprep.mubr.f32.mxu0 0.0
        %1833 = vmatmul.mubr.f32.gmra.mrb[0].mxu0 %v1741
        %v1834 = vpop.f32.mrb[0].mxu0
        %v1835 = vadd.f32 0.0, %v1834
        %v1836 = vpop.f32.mrb[0].mxu0
        %1837 = vmatprep.mubr.f32.mxu0 0.0
        %1838 = vmatmul.mubr.f32.gmra.mrb[0].mxu0 %v1744
        %v1839 = vpop.f32.mrb[0].mxu0
        %v1840 = vadd.f32 0.0, %v1839
        %v1841 = vpop.f32.mrb[0].mxu0
        %1842 = vmatprep.mubr.f32.mxu0 0.0
        %1843 = vmatmul.mubr.f32.gmra.mrb[0].mxu0 %v1747
        %v1844 = vpop.f32.mrb[0].mxu0
        %v1845 = vadd.f32 0.0, %v1844
        %v1846 = vpop.f32.mrb[0].mxu0
        %1847 = vmatprep.mubr.f32.mxu0 0.0
        %1848 = vmatmul.mubr.f32.gmra.mrb[0].mxu0 %v1750
        %v1849 = vpop.f32.mrb[0].mxu0
        %v1850 = vadd.f32 0.0, %v1849
        %v1851 = vpop.f32.mrb[0].mxu0
        %1852 = vmatprep.mubr.f32.mxu0 0.0
        %1853 = vmatmul.mubr.f32.gmra.mrb[0].mxu0 %v1753
        %v1854 = vpop.f32.mrb[0].mxu0
        %v1855 = vadd.f32 0.0, %v1854
        %v1856 = vpop.f32.mrb[0].mxu0
        %1857 = vmatprep.mubr.f32.mxu0 0.0
        %1858 = vmatmul.mubr.f32.gmra.mrb[0].mxu0 %v1756
        %v1859 = vpop.f32.mrb[0].mxu0
        %v1860 = vadd.f32 0.0, %v1859
        %v1861 = vpop.f32.mrb[0].mxu0
        %1862 = vdwg.mxu0
        %v1863 = vsel %vm1066, 1.0, 0.0
        %v1864 = vsel %vm1067, 1.0, 0.0
        %v1865 = vsel %vm1068, 1.0, 0.0
        %v1866 = vsel %vm1069, 1.0, 0.0
        %v1867 = vsel %vm1070, 1.0, 0.0
        %v1868 = vsel %vm1071, 1.0, 0.0
        %v1869 = vsel %vm1072, 1.0, 0.0
        %v1870 = vsel %vm1073, 1.0, 0.0
        %v1872 = vsel %vm1130, %v1863, 0
        %v1875 = vsel %vm1130, %v1864, 0
        %v1878 = vsel %vm1130, %v1865, 0
        %v1881 = vsel %vm1130, %v1866, 0
        %v1884 = vsel %vm1130, %v1867, 0
        %v1887 = vsel %vm1130, %v1868, 0
        %v1890 = vsel %vm1130, %v1869, 0
        %v1893 = vsel %vm1130, %v1870, 0
        %1895 = vmatprep.subr.mxu0 0.0
        %1896 = vmatpush1.msra.mxu0 1.0
        %1897 = vmatprep.subr.mxu0 0.0
        %1898 = vmatpush1.msra.mxu0 1.0
        %1899 = vmatprep.subr.mxu0 0.0
        %1900 = vmatpush1.msra.mxu0 1.0
        %1901 = vmatprep.subr.mxu0 0.0
        %1902 = vmatpush1.msra.mxu0 1.0
        %1903 = vmatprep.subr.mxu0 0.0
        %1904 = vmatpush1.msra.mxu0 1.0
        %1905 = vmatprep.subr.mxu0 0.0
        %1906 = vmatpush1.msra.mxu0 1.0
        %1907 = vmatprep.subr.mxu0 0.0
        %1908 = vmatpush1.msra.mxu0 1.0
        %1909 = vmatprep.subr.mxu0 0.0
        %1910 = vmatpush1.msra.mxu0 1.0
        %1911 = vmatprep.subr.mxu0 0.0
        %1912 = vmatpush1.msra.mxu0 0.0
        %1913 = vmatprep.subr.mxu0 0.0
        %1914 = vmatpush1.msra.mxu0 0.0
        %1915 = vmatprep.subr.mxu0 0.0
        %1916 = vmatpush1.msra.mxu0 0.0
        %1917 = vmatprep.subr.mxu0 0.0
        %1918 = vmatpush1.msra.mxu0 0.0
        %1919 = vmatprep.subr.mxu0 0.0
        %1920 = vmatpush1.msra.mxu0 0.0
        %1921 = vmatprep.subr.mxu0 0.0
        %1922 = vmatpush1.msra.mxu0 0.0
        %1923 = vmatprep.subr.mxu0 0.0
        %1924 = vmatpush1.msra.mxu0 0.0
        %1925 = vmatprep.subr.mxu0 0.0
        %1926 = vmatpush1.msra.mxu0 0.0
        %1927 = vmatprep.subr.mxu0 0.0
        %1928 = vmatpush1.msra.mxu0 0.0
        %1929 = vmatprep.subr.mxu0 0.0
        %1930 = vmatpush1.msra.mxu0 0.0
        %1931 = vmatprep.subr.mxu0 0.0
        %1932 = vmatpush1.msra.mxu0 0.0
        %1933 = vmatprep.subr.mxu0 0.0
        %1934 = vmatpush1.msra.mxu0 0.0
        %1935 = vmatprep.subr.mxu0 0.0
        %1936 = vmatpush1.msra.mxu0 0.0
        %1937 = vmatprep.subr.mxu0 0.0
        %1938 = vmatpush1.msra.mxu0 0.0
        %1939 = vmatprep.subr.mxu0 0.0
        %1940 = vmatpush1.msra.mxu0 0.0
        %1941 = vmatprep.subr.mxu0 0.0
        %1942 = vmatpush1.msra.mxu0 0.0
        %1943 = vmatprep.subr.mxu0 0.0
        %1944 = vmatpush1.msra.mxu0 0.0
        %1945 = vmatprep.subr.mxu0 0.0
        %1946 = vmatpush1.msra.mxu0 0.0
        %1947 = vmatprep.subr.mxu0 0.0
        %1948 = vmatpush1.msra.mxu0 0.0
        %1949 = vmatprep.subr.mxu0 0.0
        %1950 = vmatpush1.msra.mxu0 0.0
        %1951 = vmatprep.subr.mxu0 0.0
        %1952 = vmatpush1.msra.mxu0 0.0
        %1953 = vmatprep.subr.mxu0 0.0
        %1954 = vmatpush1.msra.mxu0 0.0
        %1955 = vmatprep.subr.mxu0 0.0
        %1956 = vmatpush1.msra.mxu0 0.0
        %1957 = vmatprep.subr.mxu0 0.0
        %1958 = vmatpush1.msra.mxu0 0.0
        %1959 = vmatprep.mubr.f32.mxu0 0.0
        %1960 = vmatmul.mubr.f32.gmra.mrb[0].mxu0 %v1872
        %v1961 = vpop.f32.mrb[0].mxu0
        %v1962 = vadd.f32 0.0, %v1961
        %v1963 = vpop.f32.mrb[0].mxu0
        %1964 = vmatprep.mubr.f32.mxu0 0.0
        %1965 = vmatmul.mubr.f32.gmra.mrb[0].mxu0 %v1875
        %v1966 = vpop.f32.mrb[0].mxu0
        %v1967 = vadd.f32 0.0, %v1966
        %v1968 = vpop.f32.mrb[0].mxu0
        %1969 = vmatprep.mubr.f32.mxu0 0.0
        %1970 = vmatmul.mubr.f32.gmra.mrb[0].mxu0 %v1878
        %v1971 = vpop.f32.mrb[0].mxu0
        %v1972 = vadd.f32 0.0, %v1971
        %v1973 = vpop.f32.mrb[0].mxu0
        %1974 = vmatprep.mubr.f32.mxu0 0.0
        %1975 = vmatmul.mubr.f32.gmra.mrb[0].mxu0 %v1881
        %v1976 = vpop.f32.mrb[0].mxu0
        %v1977 = vadd.f32 0.0, %v1976
        %v1978 = vpop.f32.mrb[0].mxu0
        %1979 = vmatprep.mubr.f32.mxu0 0.0
        %1980 = vmatmul.mubr.f32.gmra.mrb[0].mxu0 %v1884
        %v1981 = vpop.f32.mrb[0].mxu0
        %v1982 = vadd.f32 0.0, %v1981
        %v1983 = vpop.f32.mrb[0].mxu0
        %1984 = vmatprep.mubr.f32.mxu0 0.0
        %1985 = vmatmul.mubr.f32.gmra.mrb[0].mxu0 %v1887
        %v1986 = vpop.f32.mrb[0].mxu0
        %v1987 = vadd.f32 0.0, %v1986
        %v1988 = vpop.f32.mrb[0].mxu0
        %1989 = vmatprep.mubr.f32.mxu0 0.0
        %1990 = vmatmul.mubr.f32.gmra.mrb[0].mxu0 %v1890
        %v1991 = vpop.f32.mrb[0].mxu0
        %v1992 = vadd.f32 0.0, %v1991
        %v1993 = vpop.f32.mrb[0].mxu0
        %1994 = vmatprep.mubr.f32.mxu0 0.0
        %1995 = vmatmul.mubr.f32.gmra.mrb[0].mxu0 %v1893
        %v1996 = vpop.f32.mrb[0].mxu0
        %v1997 = vadd.f32 0.0, %v1996
        %v1998 = vpop.f32.mrb[0].mxu0
        %1999 = vdwg.mxu0
        %2008 = vrot.lane.b32.xlu0 %v1962, 1
        %v2009 = vpop.permute.xlu0 %2008
        %2010 = vrot.lane.b32.xlu0 %v1967, 1
        %v2011 = vpop.permute.xlu0 %2010
        %2012 = vrot.lane.b32.xlu0 %v1972, 1
        %v2013 = vpop.permute.xlu0 %2012
        %2014 = vrot.lane.b32.xlu0 %v1977, 1
        %v2015 = vpop.permute.xlu0 %2014
        %2016 = vrot.lane.b32.xlu0 %v1982, 1
        %v2017 = vpop.permute.xlu0 %2016
        %2018 = vrot.lane.b32.xlu0 %v1987, 1
        %v2019 = vpop.permute.xlu0 %2018
        %2020 = vrot.lane.b32.xlu0 %v1992, 1
        %v2021 = vpop.permute.xlu0 %2020
        %2022 = vrot.lane.b32.xlu0 %v1997, 1
        %v2023 = vpop.permute.xlu0 %2022
        %v2032 = vsel %vm1404, %v1825, %v2009
        %v2033 = vsel %vm1404, %v1830, %v2011
        %v2034 = vsel %vm1404, %v1835, %v2013
        %v2035 = vsel %vm1404, %v1840, %v2015
        %v2036 = vsel %vm1404, %v1845, %v2017
        %v2037 = vsel %vm1404, %v1850, %v2019
        %v2038 = vsel %vm1404, %v1855, %v2021
        %v2039 = vsel %vm1404, %v1860, %v2023
        %v2040 = vadd.f32 %v1718, %v2032
        %v2041 = vadd.f32 %v1719, %v2033
        %v2042 = vadd.f32 %v1720, %v2034
        %v2043 = vadd.f32 %v1721, %v2035
        %v2044 = vadd.f32 %v1722, %v2036
        %v2045 = vadd.f32 %v1723, %v2037
        %v2046 = vadd.f32 %v1724, %v2038
        %v2047 = vadd.f32 %v1725, %v2039
        %vm2048 = vcmask 15360
        %2049 = vst.msk [vmem:[%s317] sm:$0xff] %vm2048, %v2040
        %2050 = vst.msk [vmem:[%s317 + $0x8] sm:$0xff] %vm2048, %v2041
        %2051 = vst.msk [vmem:[%s317 + $0x10] sm:$0xff] %vm2048, %v2042
        %2052 = vst.msk [vmem:[%s317 + $0x18] sm:$0xff] %vm2048, %v2043
        %2053 = vst.msk [vmem:[%s317 + $0x20] sm:$0xff] %vm2048, %v2044
        %2054 = vst.msk [vmem:[%s317 + $0x28] sm:$0xff] %vm2048, %v2045
        %2055 = vst.msk [vmem:[%s317 + $0x30] sm:$0xff] %vm2048, %v2046
        %2056 = vst.msk [vmem:[%s317 + $0x38] sm:$0xff] %vm2048, %v2047
        // Predicated region
        $region53: #{multi_similarity_loss.1} parent=47 // pred_check
          %p2057 = pneg %p884
        $region54: #{multi_similarity_loss.1} parent=47 // pred_check_branch
          %2059 = sbr.rel (%p2057) target = $region56
        $region55: #{multi_similarity_loss.1} parent=47 // pred_region
          %v2060 = vld [vmem:[#allocation4] sm:$0xff]
          %v2061 = vld [vmem:[#allocation4 + $0x8] sm:$0xff]
          %v2062 = vld [vmem:[#allocation4 + $0x10] sm:$0xff]
          %v2063 = vld [vmem:[#allocation4 + $0x18] sm:$0xff]
          %v2064 = vld [vmem:[#allocation4 + $0x20] sm:$0xff]
          %v2065 = vld [vmem:[#allocation4 + $0x28] sm:$0xff]
          %v2066 = vld [vmem:[#allocation4 + $0x30] sm:$0xff]
          %v2067 = vld [vmem:[#allocation4 + $0x38] sm:$0xff]
          %v2068 = vld [vmem:[#allocation5] sm:$0xff]
          %v2069 = vld [vmem:[#allocation5 + $0x8] sm:$0xff]
          %v2070 = vld [vmem:[#allocation5 + $0x10] sm:$0xff]
          %v2071 = vld [vmem:[#allocation5 + $0x18] sm:$0xff]
          %v2072 = vld [vmem:[#allocation5 + $0x20] sm:$0xff]
          %v2073 = vld [vmem:[#allocation5 + $0x28] sm:$0xff]
          %v2074 = vld [vmem:[#allocation5 + $0x30] sm:$0xff]
          %v2075 = vld [vmem:[#allocation5 + $0x38] sm:$0xff]
          %v2076 = vlog2.pop %v2068
          %v2077 = vmul.f32 %v2076, 0.6931472
          %v2078 = vlog2.pop %v2069
          %v2079 = vmul.f32 %v2078, 0.6931472
          %v2080 = vlog2.pop %v2070
          %v2081 = vmul.f32 %v2080, 0.6931472
          %v2082 = vlog2.pop %v2071
          %v2083 = vmul.f32 %v2082, 0.6931472
          %v2084 = vlog2.pop %v2072
          %v2085 = vmul.f32 %v2084, 0.6931472
          %v2086 = vlog2.pop %v2073
          %v2087 = vmul.f32 %v2086, 0.6931472
          %v2088 = vlog2.pop %v2074
          %v2089 = vmul.f32 %v2088, 0.6931472
          %v2090 = vlog2.pop %v2075
          %v2091 = vmul.f32 %v2090, 0.6931472
          %v2092 = vadd.f32 %v2060, %v2077
          %v2093 = vadd.f32 %v2061, %v2079
          %v2094 = vadd.f32 %v2062, %v2081
          %v2095 = vadd.f32 %v2063, %v2083
          %v2096 = vadd.f32 %v2064, %v2085
          %v2097 = vadd.f32 %v2065, %v2087
          %v2098 = vadd.f32 %v2066, %v2089
          %v2099 = vadd.f32 %v2067, %v2091
          %v2100 = vmul.f32 %v2092, 0.5
          %v2101 = vmul.f32 %v2093, 0.5
          %v2102 = vmul.f32 %v2094, 0.5
          %v2103 = vmul.f32 %v2095, 0.5
          %v2104 = vmul.f32 %v2096, 0.5
          %v2105 = vmul.f32 %v2097, 0.5
          %v2106 = vmul.f32 %v2098, 0.5
          %v2107 = vmul.f32 %v2099, 0.5
          %v2108 = vld [vmem:[#allocation6] sm:$0xff]
          %v2109 = vld [vmem:[#allocation6 + $0x8] sm:$0xff]
          %v2110 = vld [vmem:[#allocation6 + $0x10] sm:$0xff]
          %v2111 = vld [vmem:[#allocation6 + $0x18] sm:$0xff]
          %v2112 = vld [vmem:[#allocation6 + $0x20] sm:$0xff]
          %v2113 = vld [vmem:[#allocation6 + $0x28] sm:$0xff]
          %v2114 = vld [vmem:[#allocation6 + $0x30] sm:$0xff]
          %v2115 = vld [vmem:[#allocation6 + $0x38] sm:$0xff]
          %v2116 = vld [vmem:[#allocation7] sm:$0xff]
          %v2117 = vld [vmem:[#allocation7 + $0x8] sm:$0xff]
          %v2118 = vld [vmem:[#allocation7 + $0x10] sm:$0xff]
          %v2119 = vld [vmem:[#allocation7 + $0x18] sm:$0xff]
          %v2120 = vld [vmem:[#allocation7 + $0x20] sm:$0xff]
          %v2121 = vld [vmem:[#allocation7 + $0x28] sm:$0xff]
          %v2122 = vld [vmem:[#allocation7 + $0x30] sm:$0xff]
          %v2123 = vld [vmem:[#allocation7 + $0x38] sm:$0xff]
          %v2124 = vlog2.pop %v2116
          %v2125 = vmul.f32 %v2124, 0.6931472
          %v2126 = vlog2.pop %v2117
          %v2127 = vmul.f32 %v2126, 0.6931472
          %v2128 = vlog2.pop %v2118
          %v2129 = vmul.f32 %v2128, 0.6931472
          %v2130 = vlog2.pop %v2119
          %v2131 = vmul.f32 %v2130, 0.6931472
          %v2132 = vlog2.pop %v2120
          %v2133 = vmul.f32 %v2132, 0.6931472
          %v2134 = vlog2.pop %v2121
          %v2135 = vmul.f32 %v2134, 0.6931472
          %v2136 = vlog2.pop %v2122
          %v2137 = vmul.f32 %v2136, 0.6931472
          %v2138 = vlog2.pop %v2123
          %v2139 = vmul.f32 %v2138, 0.6931472
          %v2140 = vadd.f32 %v2108, %v2125
          %v2141 = vadd.f32 %v2109, %v2127
          %v2142 = vadd.f32 %v2110, %v2129
          %v2143 = vadd.f32 %v2111, %v2131
          %v2144 = vadd.f32 %v2112, %v2133
          %v2145 = vadd.f32 %v2113, %v2135
          %v2146 = vadd.f32 %v2114, %v2137
          %v2147 = vadd.f32 %v2115, %v2139
          %v2148 = vmul.f32 %v2140, 0.02
          %v2149 = vmul.f32 %v2141, 0.02
          %v2150 = vmul.f32 %v2142, 0.02
          %v2151 = vmul.f32 %v2143, 0.02
          %v2152 = vmul.f32 %v2144, 0.02
          %v2153 = vmul.f32 %v2145, 0.02
          %v2154 = vmul.f32 %v2146, 0.02
          %v2155 = vmul.f32 %v2147, 0.02
          %v2156 = vadd.f32 %v2100, %v2148
          %v2157 = vadd.f32 %v2101, %v2149
          %v2158 = vadd.f32 %v2102, %v2150
          %v2159 = vadd.f32 %v2103, %v2151
          %v2160 = vadd.f32 %v2104, %v2152
          %v2161 = vadd.f32 %v2105, %v2153
          %v2162 = vadd.f32 %v2106, %v2154
          %v2163 = vadd.f32 %v2107, %v2155
          %2164 = vst.msk [vmem:[%s311] sm:$0xff] %vm1404, %v2156
          %2165 = vst.msk [vmem:[%s311 + $0x8] sm:$0xff] %vm1404, %v2157
          %2166 = vst.msk [vmem:[%s311 + $0x10] sm:$0xff] %vm1404, %v2158
          %2167 = vst.msk [vmem:[%s311 + $0x18] sm:$0xff] %vm1404, %v2159
          %2168 = vst.msk [vmem:[%s311 + $0x20] sm:$0xff] %vm1404, %v2160
          %2169 = vst.msk [vmem:[%s311 + $0x28] sm:$0xff] %vm1404, %v2161
          %2170 = vst.msk [vmem:[%s311 + $0x30] sm:$0xff] %vm1404, %v2162
          %2171 = vst.msk [vmem:[%s311 + $0x38] sm:$0xff] %vm1404, %v2163
        $region56: #{multi_similarity_loss.1} parent=47 // pred_fallthru
          _
      $region48: #{multi_similarity_loss.1} parent=35 // pred_fallthru
        _
      %s2172 = smul.u32 8, %s22
      %p2173 = scmp.lt.s32.totalorder %s2172, 7
      %s2174 = scalar_select %p2173, %s2172, 7
      %s2175 = smul.addr %s2174, 8
      %s2176 = scalar_lea.vmem %s4, %s2175
      %s2177 = smul.u32 8, %s22
      %p2178 = scmp.lt.s32.totalorder %s2177, 7
      %s2179 = scalar_select %p2178, %s2177, 7
      %s2180 = smul.addr %s2179, 8
      %s2181 = scalar_lea.vmem %s5, %s2180
      // Predicated region
      $region57: #{multi_similarity_loss.1} parent=35 // pred_check
        %p2182 = pneg %p158
      $region58: #{multi_similarity_loss.1} parent=35 // pred_check_branch
        %2184 = sbr.rel (%p2182) target = $region60
      $region59: #{multi_similarity_loss.1} parent=35 // pred_region
        %s2185 = smul.u32 8, %s22
      $region60: #{multi_similarity_loss.1} parent=35 // pred_fallthru
        _
      // Predicated region
      $region61: #{multi_similarity_loss.1} parent=35 // pred_check
        %p2186 = pneg %p184
      $region62: #{multi_similarity_loss.1} parent=35 // pred_check_branch
        %2188 = sbr.rel (%p2186) target = $region64
      $region63: #{multi_similarity_loss.1} parent=35 // pred_region
        %s2189 = smul.u32 8, %s22
      $region64: #{multi_similarity_loss.1} parent=35 // pred_fallthru
        _
      // Predicated region
      $region65: #{multi_similarity_loss.1} parent=35 // pred_check
        %p2190 = pneg %p158
      $region66: #{multi_similarity_loss.1} parent=35 // pred_check_branch
        %2192 = sbr.rel (%p2190) target = $region68
      $region67: #{multi_similarity_loss.1} parent=35 // pred_region
        %s2193 = smul.u32 8, %s22
        %p2194 = scmp.lt.s32.totalorder %s2193, 7
        %s2195 = scalar_select %p2194, %s2193, 7
        %s2196 = smul.addr %s2195, 8
        %s2197 = scalar_lea.vmem %s4, %s2196
      $region68: #{multi_similarity_loss.1} parent=35 // pred_fallthru
        _
      // Predicated region
      $region69: #{multi_similarity_loss.1} parent=35 // pred_check
        %p2198 = pneg %p184
      $region70: #{multi_similarity_loss.1} parent=35 // pred_check_branch
        %2200 = sbr.rel (%p2198) target = $region72
      $region71: #{multi_similarity_loss.1} parent=35 // pred_region
        %s2201 = smul.u32 8, %s22
        %p2202 = scmp.lt.s32.totalorder %s2201, 7
        %s2203 = scalar_select %p2202, %s2201, 7
        %s2204 = smul.addr %s2203, 8
        %s2205 = scalar_lea.vmem %s5, %s2204
      $region72: #{multi_similarity_loss.1} parent=35 // pred_fallthru
        _
    $region36: #{multi_similarity_loss.1} parent=5 // pred_fallthru
      _
    %p2206 = scmp.le.s32.totalorder 2, %s12
    // Predicated region
    $region73: #{multi_similarity_loss.1} parent=5 // pred_check
      %p2207 = pneg %p2206
    $region74: #{multi_similarity_loss.1} parent=5 // pred_check_branch
      %2209 = sbr.rel (%p2207) target = $region76
    $region75: #{multi_similarity_loss.1} parent=5 // pred_region
      %s2210 = ssub.s32 %s12, 2
    $region76: #{multi_similarity_loss.1} parent=5 // pred_fallthru
      _
  $region6: #{multi_similarity_loss.1} parent=0 // loop_footer
    %s16 = sadd.s32 1, %s12
  $region7: #{multi_similarity_loss.1} parent=0 // loop_footer_branch
    %11 = sbr.rel target = $region3
  $region8: #{multi_similarity_loss.1} parent=0 // loop_exit
    _

</llo_original>
